<compile_context>
chip_gen: v5e
topology: v5e:2x2
jax: 0.10.0
libtpu: 0.0.40
codegen_flags: <defaults>
</compile_context>

<pallas_src>
import math

import jax
import jax.numpy as jnp
from jax.experimental import pallas as pl
from jax.experimental.pallas import tpu as pltpu


def _dc_kernel(b_ref,
               xr_ref, xi_ref, ktr_ref, kti_ref, mt_ref,
               fhr_ref, fhi_ref, fhs_ref,
               fwr_ref, fwi_ref, fws_ref,
               or_ref, oi_ref):
    """One grid step: TN (batch*coil) slices through fwd-DFT, DC blend, inv-DFT.

    xr/xi   : (TN, H, W)   image-domain real/imag (f32)
    ktr/kti : (TN, W, H)   measured k-space, pre-transposed (blend happens in
                           the transposed layout between the two DFT legs)
    mt      : (1|TN, W, H) sampling mask, transposed
    fh*/fw* : (H, H)/(W, W) forward ortho-DFT matrices (real, imag, real+imag)
                           in the matmul compute dtype (f32 or bf16)
    or/oi   : (TN, H, W)   output real/imag (f32)
    """
    b = b_ref[0]                               # 1 / (1 + reg_param)
    tn, hp, wp = xr_ref.shape
    cdt = fwr_ref.dtype                        # matmul operand dtype

    fhr = fhr_ref[...]
    fhi = fhi_ref[...]
    fhs = fhs_ref[...]
    fwr = fwr_ref[...]
    fwi = fwi_ref[...]
    fws = fws_ref[...]

    def wdot(x, mat):
        # (TN, H, W) . (W, W) as one flat lane-dense (TN*H, W) MXU matmul.
        y = jnp.dot(x.reshape(tn * hp, wp).astype(cdt), mat,
                    preferred_element_type=jnp.float32)
        return y.reshape(tn, hp, wp)

    def hdot(x, mat):
        # (TN, W, H) . (H, H) as one flat lane-dense (TN*W, H) MXU matmul.
        # DFT matrices are symmetric, so (F_H @ A)^T == A^T @ F_H.
        y = jnp.dot(x.reshape(tn * wp, hp).astype(cdt), mat,
                    preferred_element_type=jnp.float32)
        return y.reshape(tn, wp, hp)

    # Gauss 3-multiply complex matmuls; the inverse DFT is the conjugate of
    # the forward one, realized purely through sign flips (12 real matmuls for
    # the whole forward+inverse 2D transform).
    def cmul_fwd(dot, ar, ai, mr, mi, ms):     # (ar + i ai) @ (mr + i mi)
        p1 = dot(ar, mr)
        p2 = dot(ai, mi)
        p3 = dot(ar + ai, ms)
        return p1 - p2, p3 - p1 - p2

    def cmul_inv(dot, ar, ai, mr, mi, ms):     # (ar + i ai) @ (mr - i mi)
        p1 = dot(ar, mr)
        p2 = dot(ai, mi)
        p3 = dot(ar - ai, ms)
        return p1 + p2, p1 - p2 - p3

    xr = xr_ref[...]
    xi = xi_ref[...]

    # forward W-side DFT:  t = x @ F_W
    tr, ti = cmul_fwd(wdot, xr, xi, fwr, fwi, fws)

    # transpose to (TN, W, H)  (XLU work; has slack in this MXU-bound kernel)
    trT = jnp.transpose(tr, (0, 2, 1))
    tiT = jnp.transpose(ti, (0, 2, 1))

    # forward H-side DFT in transposed layout:  kreg^T = t^T @ F_H
    krT, kiT = cmul_fwd(hdot, trT, tiT, fhr, fhi, fhs)

    # data consistency: kest = (1 - b*mask)*kreg + b*k, with b = 1/(1+reg).
    # Identical to mask*(reg/(1+reg))*kreg + b*k + (~mask)*kreg; the b*k term
    # is intentionally NOT mask-gated, matching the torch reference.  s stays
    # at its natural (1|TN, W, H) shape; the multiplies broadcast over TN.
    s = 1.0 - b * mt_ref[...]
    kestr = s * krT + b * ktr_ref[...]
    kesti = s * kiT + b * kti_ref[...]

    # inverse H-side DFT (conjugate matrix), still in transposed layout
    yrT, yiT = cmul_inv(hdot, kestr, kesti, fhr, fhi, fhs)

    # transpose back to (TN, H, W)
    yr = jnp.transpose(yrT, (0, 2, 1))
    yi = jnp.transpose(yiT, (0, 2, 1))

    # inverse W-side DFT (conjugate matrix)
    xo_r, xo_i = cmul_inv(wdot, yr, yi, fwr, fwi, fws)

    or_ref[...] = xo_r
    oi_ref[...] = xo_i


def _dft_mats(n, sign):
    """Real/imag of the ortho DFT matrix exp(sign*2*pi*i*m*k/n)/sqrt(n).

    (m*k) is reduced mod n in integer arithmetic before scaling so the angles
    stay at machine precision even for large n.
    """
    idx = jnp.arange(n, dtype=jnp.int32)
    mk = (idx[:, None] * idx[None, :]) % n
    ang = (sign * 2.0 * jnp.pi / float(n)) * mk.astype(jnp.float32)
    scale = jnp.float32(1.0 / math.sqrt(n))
    return jnp.cos(ang) * scale, jnp.sin(ang) * scale


def _round_up(n, m):
    return ((n + m - 1) // m) * m


def _tpu_vmem_capacity_bytes():
    """Per-TensorCore VMEM capacity; conservative fallback if the query fails."""
    try:
        return int(pltpu.get_tpu_info().vmem_capacity_bytes)
    except Exception:
        return 64 << 20   # v7x floor — safe on every generation


def _pick_tn(n_slices, hp, wp, mask_per_slice, vmem_budget_bytes,
             prefer_even_grid):
    """Largest divisor of n_slices whose per-step VMEM working set fits.

    Accounts for the double-buffered in/out slabs, the double-buffered DFT
    matrices and the mask, plus the in-kernel f32 temporaries.  Prefers a
    grid length >= 2 (DMA/compute overlap); on v7x-class parts additionally
    prefers an even grid so the two TensorCores stay balanced.
    """
    plane = 4 * hp * wp
    fixed = 2 * 4 * 3 * (hp * hp + wp * wp)          # 6 DFT matrices, 2 buffers
    if not mask_per_slice:
        fixed += 2 * plane                           # constant mask plane
    # per slice: 4 in + 2 out slabs double-buffered (12 planes) + ~12 live
    # f32 temporaries (matmul operands/results, transposed copies).
    per_slice = plane * 24 + (2 * plane if mask_per_slice else 0)
    cap = max(1, (vmem_budget_bytes - fixed) // per_slice)

    divisors = [d for d in range(1, n_slices + 1) if n_slices % d == 0]
    fitting = [d for d in divisors if d <= cap] or [1]

    def grid(d):
        return n_slices // d

    if prefer_even_grid and any(grid(d) % 2 == 0 for d in fitting):
        cands = [d for d in fitting if grid(d) % 2 == 0]
    elif any(grid(d) >= 2 for d in fitting):
        cands = [d for d in fitting if grid(d) >= 2]
    else:
        cands = fitting
    return max(cands)


def single_coil_dc(xreg, k, mask, reg_param, norm="ortho", use_bf16=False):
    """Pallas implementation of SingleCoilDC.forward.

    xreg, k   : complex64 arrays of shape (B, H, W, C)
    mask      : bool array (4D) broadcastable to (B, H, W, C)
    reg_param : python / jnp float scalar
    use_bf16  : cast matmul operands to bf16 (f32 accumulation) for ~3-4x MXU
                throughput; off by default — re-validate accuracy at
                production H/W before enabling.
    """
    assert norm == "ortho", "only ortho norm implemented"
    B, H, W, C = xreg.shape
    N = B * C
    # Pad spatial dims to sublane multiples so the flat (TN*H,W)/(TN*W,H)
    # reshapes are layout-free; DFT matrices are zero-padded correspondingly
    # and the output is cropped, so results are exact.
    Hp = _round_up(H, 8)
    Wp = _round_up(W, 8)

    def to_nhw(z):
        # (B, H, W, C) -> (B, C, H, W) -> (N, H, W)
        return jnp.transpose(z, (0, 3, 1, 2)).reshape(N, H, W)

    def pad_hw(a):
        if Hp == H and Wp == W:
            return a
        return jnp.pad(a, ((0, 0), (0, Hp - H), (0, Wp - W)))

    xr = pad_hw(to_nhw(jnp.real(xreg).astype(jnp.float32)))
    xi = pad_hw(to_nhw(jnp.imag(xreg).astype(jnp.float32)))
    # k is consumed in transposed (N, W, H) layout (the DC blend happens after
    # the in-kernel transpose), so transpose it once here in the wrapper.
    ktr = jnp.transpose(pad_hw(to_nhw(jnp.real(k).astype(jnp.float32))), (0, 2, 1))
    kti = jnp.transpose(pad_hw(to_nhw(jnp.imag(k).astype(jnp.float32))), (0, 2, 1))

    # Mask: if it does not vary over batch/coil (typical (1,H,W,1) sampling
    # mask), ship one transposed (1, W, H) plane with a constant index_map so
    # it is fetched once and stays resident.  Any other shape takes the
    # full-slab path (correct, just heavier).
    mask = jnp.asarray(mask)
    const_mask = (mask.ndim == 4 and mask.shape[0] == 1 and mask.shape[3] == 1)
    if const_mask:
        m2 = jnp.broadcast_to(mask.astype(jnp.float32)[0, :, :, 0], (H, W))
        if Hp != H or Wp != W:
            m2 = jnp.pad(m2, ((0, Hp - H), (0, Wp - W)))
        mt = jnp.transpose(m2, (1, 0)).reshape(1, Wp, Hp)
    else:
        mfull = to_nhw(jnp.broadcast_to(mask, (B, H, W, C)).astype(jnp.float32))
        mt = jnp.transpose(pad_hw(mfull), (0, 2, 1))

    # Forward DFT matrices only (inverse = conjugate, handled in-kernel).
    cdt = jnp.bfloat16 if use_bf16 else jnp.float32
    fhr, fhi = _dft_mats(H, -1.0)
    fwr, fwi = _dft_mats(W, -1.0)
    if Hp != H:
        fhr = jnp.pad(fhr, ((0, Hp - H), (0, Hp - H)))
        fhi = jnp.pad(fhi, ((0, Hp - H), (0, Hp - H)))
    if Wp != W:
        fwr = jnp.pad(fwr, ((0, Wp - W), (0, Wp - W)))
        fwi = jnp.pad(fwi, ((0, Wp - W), (0, Wp - W)))
    fhs = (fhr + fhi).astype(cdt)
    fws = (fwr + fwi).astype(cdt)
    fhr = fhr.astype(cdt)
    fhi = fhi.astype(cdt)
    fwr = fwr.astype(cdt)
    fwi = fwi.astype(cdt)

    rp = jnp.asarray(reg_param, dtype=jnp.float32)
    b = jnp.reshape(1.0 / (1.0 + rp), (1,)).astype(jnp.float32)

    # Generation-aware VMEM limit / TN budget / grid preference.
    vmem_cap = _tpu_vmem_capacity_bytes()
    two_core_hint = vmem_cap < (100 << 20)     # v7x-class: 64 MiB / TC, 2 TCs
    vmem_limit = (44 << 20) if two_core_hint else (96 << 20)
    budget = vmem_limit - (4 << 20)

    TN = _pick_tn(N, Hp, Wp, mask_per_slice=not const_mask,
                  vmem_budget_bytes=budget, prefer_even_grid=two_core_hint)
    grid = (N // TN,)

    xin_spec = pl.BlockSpec((TN, Hp, Wp), lambda i: (i, 0, 0))
    kin_spec = pl.BlockSpec((TN, Wp, Hp), lambda i: (i, 0, 0))
    out_spec = pl.BlockSpec((TN, Hp, Wp), lambda i: (i, 0, 0))
    if const_mask:
        m_spec = pl.BlockSpec((1, Wp, Hp), lambda i: (0, 0, 0))
    else:
        m_spec = kin_spec
    h_mat_spec = pl.BlockSpec((Hp, Hp), lambda i: (0, 0))
    w_mat_spec = pl.BlockSpec((Wp, Wp), lambda i: (0, 0))

    out_r, out_i = pl.pallas_call(
        _dc_kernel,
        out_shape=(jax.ShapeDtypeStruct((N, Hp, Wp), jnp.float32),
                   jax.ShapeDtypeStruct((N, Hp, Wp), jnp.float32)),
        grid=grid,
        in_specs=[
            pl.BlockSpec(memory_space=pltpu.SMEM),           # b = 1/(1+reg)
            xin_spec, xin_spec,                              # xr, xi
            kin_spec, kin_spec,                              # ktr, kti (transposed)
            m_spec,                                          # mask (transposed)
            h_mat_spec, h_mat_spec, h_mat_spec,              # fhr, fhi, fhs
            w_mat_spec, w_mat_spec, w_mat_spec,              # fwr, fwi, fws
        ],
        out_specs=(out_spec, out_spec),
        compiler_params=pltpu.CompilerParams(
            dimension_semantics=("parallel",),
            vmem_limit_bytes=vmem_limit),
    )(b, xr, xi, ktr, kti, mt, fhr, fhi, fhs, fwr, fwi, fws)

    out = jax.lax.complex(out_r, out_i)                      # complex64
    if Hp != H or Wp != W:
        out = out[:, :H, :W]
    return out.reshape(B, C, H, W).transpose(0, 2, 3, 1)     # (B, H, W, C)


def _reference(xreg, k, mask, reg_param, norm="ortho"):
    kreg = jnp.fft.fftn(xreg, axes=(-3, -2), norm=norm)
    maskc = mask.astype(kreg.dtype)
    kest = (maskc * (reg_param / (1.0 + reg_param)) * kreg
            + 1.0 / (1.0 + reg_param) * k
            + (1.0 - maskc) * kreg)
    return jnp.fft.ifftn(kest, axes=(-3, -2), norm=norm)


if __name__ == "__main__":
    key = jax.random.PRNGKey(0)
    B, H, W, C = 2, 16, 16, 2
    k1, k2, k3, k4, k5 = jax.random.split(key, 5)

    xreg = (jax.random.normal(k1, (B, H, W, C), dtype=jnp.float32)
            + 1j * jax.random.normal(k2, (B, H, W, C), dtype=jnp.float32)
            ).astype(jnp.complex64)
    kk = (jax.random.normal(k3, (B, H, W, C), dtype=jnp.float32)
          + 1j * jax.random.normal(k4, (B, H, W, C), dtype=jnp.float32)
          ).astype(jnp.complex64)
    mask = jax.random.bernoulli(k5, 0.5, (1, H, W, 1))   # broadcasts like torch
    reg_param = 0.05

    out = single_coil_dc(xreg, kk, mask, reg_param)
    out = jax.block_until_ready(out)

    ref = _reference(xreg, kk, mask, jnp.float32(reg_param))
    assert out.shape == ref.shape and out.dtype == jnp.complex64
    err = float(jnp.max(jnp.abs(out - ref)))
    assert err < 1e-3, f"mismatch vs FFT reference: {err}"

    print("KERNEL_OK")
</pallas_src>

<mosaic_0001>
module attributes {stable_mosaic.version = 11 : i64} {
  func.func @_dc_kernel(%arg0: i32, %arg1: memref<1xf32, #tpu.memory_space<smem>>, %arg2: memref<2x16x16xf32, #tpu.memory_space<vmem>>, %arg3: memref<2x16x16xf32, #tpu.memory_space<vmem>>, %arg4: memref<2x16x16xf32, #tpu.memory_space<vmem>>, %arg5: memref<2x16x16xf32, #tpu.memory_space<vmem>>, %arg6: memref<1x16x16xf32, #tpu.memory_space<vmem>>, %arg7: memref<16x16xf32, #tpu.memory_space<vmem>>, %arg8: memref<16x16xf32, #tpu.memory_space<vmem>>, %arg9: memref<16x16xf32, #tpu.memory_space<vmem>>, %arg10: memref<16x16xf32, #tpu.memory_space<vmem>>, %arg11: memref<16x16xf32, #tpu.memory_space<vmem>>, %arg12: memref<16x16xf32, #tpu.memory_space<vmem>>, %arg13: memref<2x16x16xf32, #tpu.memory_space<vmem>>, %arg14: memref<2x16x16xf32, #tpu.memory_space<vmem>>) attributes {dimension_semantics = [#tpu.dimension_semantics<parallel>], iteration_bounds = array<i64: 2>, scalar_prefetch = 0 : i64, scratch_operands = 0 : i64, tpu.core_type = #tpu.core_type<tc>, window_params = [{transform_indices = @transform_0, window_bounds = array<i64: 1>}, {transform_indices = @transform_1, window_bounds = array<i64: 2, 16, 16>}, {transform_indices = @transform_2, window_bounds = array<i64: 2, 16, 16>}, {transform_indices = @transform_3, window_bounds = array<i64: 2, 16, 16>}, {transform_indices = @transform_4, window_bounds = array<i64: 2, 16, 16>}, {pipeline_mode = #tpu.pipeline_mode<synchronous>, transform_indices = @transform_5, window_bounds = array<i64: 1, 16, 16>}, {pipeline_mode = #tpu.pipeline_mode<synchronous>, transform_indices = @transform_6, window_bounds = array<i64: 16, 16>}, {pipeline_mode = #tpu.pipeline_mode<synchronous>, transform_indices = @transform_7, window_bounds = array<i64: 16, 16>}, {pipeline_mode = #tpu.pipeline_mode<synchronous>, transform_indices = @transform_8, window_bounds = array<i64: 16, 16>}, {pipeline_mode = #tpu.pipeline_mode<synchronous>, transform_indices = @transform_9, window_bounds = array<i64: 16, 16>}, {pipeline_mode = #tpu.pipeline_mode<synchronous>, transform_indices = @transform_10, window_bounds = array<i64: 16, 16>}, {pipeline_mode = #tpu.pipeline_mode<synchronous>, transform_indices = @transform_11, window_bounds = array<i64: 16, 16>}, {transform_indices = @transform_12, window_bounds = array<i64: 2, 16, 16>}, {transform_indices = @transform_13, window_bounds = array<i64: 2, 16, 16>}]} {
    %c0 = arith.constant 0 : index
    %0 = memref.load %arg1[%c0] : memref<1xf32, #tpu.memory_space<smem>>
    %c0_0 = arith.constant 0 : index
    %c0_1 = arith.constant 0 : index
    %1 = vector.load %arg7[%c0_0, %c0_1] : memref<16x16xf32, #tpu.memory_space<vmem>>, vector<16x16xf32>
    %c0_2 = arith.constant 0 : index
    %c0_3 = arith.constant 0 : index
    %2 = vector.load %arg8[%c0_2, %c0_3] : memref<16x16xf32, #tpu.memory_space<vmem>>, vector<16x16xf32>
    %c0_4 = arith.constant 0 : index
    %c0_5 = arith.constant 0 : index
    %3 = vector.load %arg9[%c0_4, %c0_5] : memref<16x16xf32, #tpu.memory_space<vmem>>, vector<16x16xf32>
    %c0_6 = arith.constant 0 : index
    %c0_7 = arith.constant 0 : index
    %4 = vector.load %arg10[%c0_6, %c0_7] : memref<16x16xf32, #tpu.memory_space<vmem>>, vector<16x16xf32>
    %c0_8 = arith.constant 0 : index
    %c0_9 = arith.constant 0 : index
    %5 = vector.load %arg11[%c0_8, %c0_9] : memref<16x16xf32, #tpu.memory_space<vmem>>, vector<16x16xf32>
    %c0_10 = arith.constant 0 : index
    %c0_11 = arith.constant 0 : index
    %6 = vector.load %arg12[%c0_10, %c0_11] : memref<16x16xf32, #tpu.memory_space<vmem>>, vector<16x16xf32>
    %c0_12 = arith.constant 0 : index
    %c0_13 = arith.constant 0 : index
    %c0_14 = arith.constant 0 : index
    %7 = vector.load %arg2[%c0_12, %c0_13, %c0_14] : memref<2x16x16xf32, #tpu.memory_space<vmem>>, vector<2x16x16xf32>
    %c0_15 = arith.constant 0 : index
    %c0_16 = arith.constant 0 : index
    %c0_17 = arith.constant 0 : index
    %8 = vector.load %arg3[%c0_15, %c0_16, %c0_17] : memref<2x16x16xf32, #tpu.memory_space<vmem>>, vector<2x16x16xf32>
    %9 = vector.shape_cast %7 : vector<2x16x16xf32> to vector<32x16xf32>
    %cst = arith.constant dense<0.000000e+00> : vector<32x16xf32>
    %10 = tpu.matmul %9, %4, %cst {dimension_numbers = #tpu.dot_dimension_numbers<[1], [0], [0], [1], [0, 0, 1, 1], [], []>} : vector<32x16xf32>, vector<16x16xf32>, vector<32x16xf32> -> vector<32x16xf32>
    %11 = vector.shape_cast %10 : vector<32x16xf32> to vector<2x16x16xf32>
    %12 = vector.shape_cast %8 : vector<2x16x16xf32> to vector<32x16xf32>
    %cst_18 = arith.constant dense<0.000000e+00> : vector<32x16xf32>
    %13 = tpu.matmul %12, %5, %cst_18 {dimension_numbers = #tpu.dot_dimension_numbers<[1], [0], [0], [1], [0, 0, 1, 1], [], []>} : vector<32x16xf32>, vector<16x16xf32>, vector<32x16xf32> -> vector<32x16xf32>
    %14 = vector.shape_cast %13 : vector<32x16xf32> to vector<2x16x16xf32>
    %15 = arith.addf %7, %8 : vector<2x16x16xf32>
    %16 = vector.shape_cast %15 : vector<2x16x16xf32> to vector<32x16xf32>
    %cst_19 = arith.constant dense<0.000000e+00> : vector<32x16xf32>
    %17 = tpu.matmul %16, %6, %cst_19 {dimension_numbers = #tpu.dot_dimension_numbers<[1], [0], [0], [1], [0, 0, 1, 1], [], []>} : vector<32x16xf32>, vector<16x16xf32>, vector<32x16xf32> -> vector<32x16xf32>
    %18 = vector.shape_cast %17 : vector<32x16xf32> to vector<2x16x16xf32>
    %19 = arith.subf %11, %14 : vector<2x16x16xf32>
    %20 = arith.subf %18, %11 : vector<2x16x16xf32>
    %21 = arith.subf %20, %14 : vector<2x16x16xf32>
    %22 = tpu.transpose %19, [0, 2, 1] : vector<2x16x16xf32> -> vector<2x16x16xf32>
    %23 = tpu.transpose %21, [0, 2, 1] : vector<2x16x16xf32> -> vector<2x16x16xf32>
    %24 = vector.shape_cast %22 : vector<2x16x16xf32> to vector<32x16xf32>
    %cst_20 = arith.constant dense<0.000000e+00> : vector<32x16xf32>
    %25 = tpu.matmul %24, %1, %cst_20 {dimension_numbers = #tpu.dot_dimension_numbers<[1], [0], [0], [1], [0, 0, 1, 1], [], []>} : vector<32x16xf32>, vector<16x16xf32>, vector<32x16xf32> -> vector<32x16xf32>
    %26 = vector.shape_cast %25 : vector<32x16xf32> to vector<2x16x16xf32>
    %27 = vector.shape_cast %23 : vector<2x16x16xf32> to vector<32x16xf32>
    %cst_21 = arith.constant dense<0.000000e+00> : vector<32x16xf32>
    %28 = tpu.matmul %27, %2, %cst_21 {dimension_numbers = #tpu.dot_dimension_numbers<[1], [0], [0], [1], [0, 0, 1, 1], [], []>} : vector<32x16xf32>, vector<16x16xf32>, vector<32x16xf32> -> vector<32x16xf32>
    %29 = vector.shape_cast %28 : vector<32x16xf32> to vector<2x16x16xf32>
    %30 = arith.addf %22, %23 : vector<2x16x16xf32>
    %31 = vector.shape_cast %30 : vector<2x16x16xf32> to vector<32x16xf32>
    %cst_22 = arith.constant dense<0.000000e+00> : vector<32x16xf32>
    %32 = tpu.matmul %31, %3, %cst_22 {dimension_numbers = #tpu.dot_dimension_numbers<[1], [0], [0], [1], [0, 0, 1, 1], [], []>} : vector<32x16xf32>, vector<16x16xf32>, vector<32x16xf32> -> vector<32x16xf32>
    %33 = vector.shape_cast %32 : vector<32x16xf32> to vector<2x16x16xf32>
    %34 = arith.subf %26, %29 : vector<2x16x16xf32>
    %35 = arith.subf %33, %26 : vector<2x16x16xf32>
    %36 = arith.subf %35, %29 : vector<2x16x16xf32>
    %c0_23 = arith.constant 0 : index
    %c0_24 = arith.constant 0 : index
    %c0_25 = arith.constant 0 : index
    %37 = vector.load %arg6[%c0_23, %c0_24, %c0_25] : memref<1x16x16xf32, #tpu.memory_space<vmem>>, vector<1x16x16xf32>
    %38 = vector.broadcast %0 : f32 to vector<1x16x16xf32>
    %39 = arith.mulf %38, %37 : vector<1x16x16xf32>
    %cst_26 = arith.constant 1.000000e+00 : f32
    %40 = vector.broadcast %cst_26 : f32 to vector<1x16x16xf32>
    %41 = arith.subf %40, %39 : vector<1x16x16xf32>
    %42 = vector.broadcast %41 : vector<1x16x16xf32> to vector<2x16x16xf32>
    %43 = arith.mulf %42, %34 : vector<2x16x16xf32>
    %c0_27 = arith.constant 0 : index
    %c0_28 = arith.constant 0 : index
    %c0_29 = arith.constant 0 : index
    %44 = vector.load %arg4[%c0_27, %c0_28, %c0_29] : memref<2x16x16xf32, #tpu.memory_space<vmem>>, vector<2x16x16xf32>
    %45 = vector.broadcast %0 : f32 to vector<2x16x16xf32>
    %46 = arith.mulf %45, %44 : vector<2x16x16xf32>
    %47 = arith.addf %43, %46 : vector<2x16x16xf32>
    %48 = vector.broadcast %41 : vector<1x16x16xf32> to vector<2x16x16xf32>
    %49 = arith.mulf %48, %36 : vector<2x16x16xf32>
    %c0_30 = arith.constant 0 : index
    %c0_31 = arith.constant 0 : index
    %c0_32 = arith.constant 0 : index
    %50 = vector.load %arg5[%c0_30, %c0_31, %c0_32] : memref<2x16x16xf32, #tpu.memory_space<vmem>>, vector<2x16x16xf32>
    %51 = vector.broadcast %0 : f32 to vector<2x16x16xf32>
    %52 = arith.mulf %51, %50 : vector<2x16x16xf32>
    %53 = arith.addf %49, %52 : vector<2x16x16xf32>
    %54 = vector.shape_cast %47 : vector<2x16x16xf32> to vector<32x16xf32>
    %cst_33 = arith.constant dense<0.000000e+00> : vector<32x16xf32>
    %55 = tpu.matmul %54, %1, %cst_33 {dimension_numbers = #tpu.dot_dimension_numbers<[1], [0], [0], [1], [0, 0, 1, 1], [], []>} : vector<32x16xf32>, vector<16x16xf32>, vector<32x16xf32> -> vector<32x16xf32>
    %56 = vector.shape_cast %55 : vector<32x16xf32> to vector<2x16x16xf32>
    %57 = vector.shape_cast %53 : vector<2x16x16xf32> to vector<32x16xf32>
    %cst_34 = arith.constant dense<0.000000e+00> : vector<32x16xf32>
    %58 = tpu.matmul %57, %2, %cst_34 {dimension_numbers = #tpu.dot_dimension_numbers<[1], [0], [0], [1], [0, 0, 1, 1], [], []>} : vector<32x16xf32>, vector<16x16xf32>, vector<32x16xf32> -> vector<32x16xf32>
    %59 = vector.shape_cast %58 : vector<32x16xf32> to vector<2x16x16xf32>
    %60 = arith.subf %47, %53 : vector<2x16x16xf32>
    %61 = vector.shape_cast %60 : vector<2x16x16xf32> to vector<32x16xf32>
    %cst_35 = arith.constant dense<0.000000e+00> : vector<32x16xf32>
    %62 = tpu.matmul %61, %3, %cst_35 {dimension_numbers = #tpu.dot_dimension_numbers<[1], [0], [0], [1], [0, 0, 1, 1], [], []>} : vector<32x16xf32>, vector<16x16xf32>, vector<32x16xf32> -> vector<32x16xf32>
    %63 = vector.shape_cast %62 : vector<32x16xf32> to vector<2x16x16xf32>
    %64 = arith.addf %56, %59 : vector<2x16x16xf32>
    %65 = arith.subf %56, %59 : vector<2x16x16xf32>
    %66 = arith.subf %65, %63 : vector<2x16x16xf32>
    %67 = tpu.transpose %64, [0, 2, 1] : vector<2x16x16xf32> -> vector<2x16x16xf32>
    %68 = tpu.transpose %66, [0, 2, 1] : vector<2x16x16xf32> -> vector<2x16x16xf32>
    %69 = vector.shape_cast %67 : vector<2x16x16xf32> to vector<32x16xf32>
    %cst_36 = arith.constant dense<0.000000e+00> : vector<32x16xf32>
    %70 = tpu.matmul %69, %4, %cst_36 {dimension_numbers = #tpu.dot_dimension_numbers<[1], [0], [0], [1], [0, 0, 1, 1], [], []>} : vector<32x16xf32>, vector<16x16xf32>, vector<32x16xf32> -> vector<32x16xf32>
    %71 = vector.shape_cast %70 : vector<32x16xf32> to vector<2x16x16xf32>
    %72 = vector.shape_cast %68 : vector<2x16x16xf32> to vector<32x16xf32>
    %cst_37 = arith.constant dense<0.000000e+00> : vector<32x16xf32>
    %73 = tpu.matmul %72, %5, %cst_37 {dimension_numbers = #tpu.dot_dimension_numbers<[1], [0], [0], [1], [0, 0, 1, 1], [], []>} : vector<32x16xf32>, vector<16x16xf32>, vector<32x16xf32> -> vector<32x16xf32>
    %74 = vector.shape_cast %73 : vector<32x16xf32> to vector<2x16x16xf32>
    %75 = arith.subf %67, %68 : vector<2x16x16xf32>
    %76 = vector.shape_cast %75 : vector<2x16x16xf32> to vector<32x16xf32>
    %cst_38 = arith.constant dense<0.000000e+00> : vector<32x16xf32>
    %77 = tpu.matmul %76, %6, %cst_38 {dimension_numbers = #tpu.dot_dimension_numbers<[1], [0], [0], [1], [0, 0, 1, 1], [], []>} : vector<32x16xf32>, vector<16x16xf32>, vector<32x16xf32> -> vector<32x16xf32>
    %78 = vector.shape_cast %77 : vector<32x16xf32> to vector<2x16x16xf32>
    %79 = arith.addf %71, %74 : vector<2x16x16xf32>
    %80 = arith.subf %71, %74 : vector<2x16x16xf32>
    %81 = arith.subf %80, %78 : vector<2x16x16xf32>
    %c0_39 = arith.constant 0 : index
    %c0_40 = arith.constant 0 : index
    %c0_41 = arith.constant 0 : index
    %82 = vector.load %arg13[%c0_39, %c0_40, %c0_41] : memref<2x16x16xf32, #tpu.memory_space<vmem>>, vector<2x16x16xf32>
    tpu.vector_store %arg13[%c0_39, %c0_40, %c0_41], %79 {strides = array<i32>} : memref<2x16x16xf32, #tpu.memory_space<vmem>>, vector<2x16x16xf32>,
    %c0_42 = arith.constant 0 : index
    %c0_43 = arith.constant 0 : index
    %c0_44 = arith.constant 0 : index
    %83 = vector.load %arg14[%c0_42, %c0_43, %c0_44] : memref<2x16x16xf32, #tpu.memory_space<vmem>>, vector<2x16x16xf32>
    tpu.vector_store %arg14[%c0_42, %c0_43, %c0_44], %81 {strides = array<i32>} : memref<2x16x16xf32, #tpu.memory_space<vmem>>, vector<2x16x16xf32>,
    return
  }
  func.func @transform_0(%arg0: i32) -> i32 {
    %c0_i32 = arith.constant 0 : i32
    %c0_i32_0 = arith.constant 0 : i32
    return %c0_i32 : i32
  }
  func.func @transform_1(%arg0: i32) -> (i32, i32, i32) {
    %c0_i32 = arith.constant 0 : i32
    %c0_i32_0 = arith.constant 0 : i32
    %c0_i32_1 = arith.constant 0 : i32
    return %arg0, %c0_i32, %c0_i32_0 : i32, i32, i32
  }
  func.func @transform_2(%arg0: i32) -> (i32, i32, i32) {
    %c0_i32 = arith.constant 0 : i32
    %c0_i32_0 = arith.constant 0 : i32
    %c0_i32_1 = arith.constant 0 : i32
    return %arg0, %c0_i32, %c0_i32_0 : i32, i32, i32
  }
  func.func @transform_3(%arg0: i32) -> (i32, i32, i32) {
    %c0_i32 = arith.constant 0 : i32
    %c0_i32_0 = arith.constant 0 : i32
    %c0_i32_1 = arith.constant 0 : i32
    return %arg0, %c0_i32, %c0_i32_0 : i32, i32, i32
  }
  func.func @transform_4(%arg0: i32) -> (i32, i32, i32) {
    %c0_i32 = arith.constant 0 : i32
    %c0_i32_0 = arith.constant 0 : i32
    %c0_i32_1 = arith.constant 0 : i32
    return %arg0, %c0_i32, %c0_i32_0 : i32, i32, i32
  }
  func.func @transform_5(%arg0: i32) -> (i32, i32, i32) {
    %c0_i32 = arith.constant 0 : i32
    %c0_i32_0 = arith.constant 0 : i32
    %c0_i32_1 = arith.constant 0 : i32
    %c0_i32_2 = arith.constant 0 : i32
    return %c0_i32, %c0_i32_0, %c0_i32_1 : i32, i32, i32
  }
  func.func @transform_6(%arg0: i32) -> (i32, i32) {
    %c0_i32 = arith.constant 0 : i32
    %c0_i32_0 = arith.constant 0 : i32
    %c0_i32_1 = arith.constant 0 : i32
    return %c0_i32, %c0_i32_0 : i32, i32
  }
  func.func @transform_7(%arg0: i32) -> (i32, i32) {
    %c0_i32 = arith.constant 0 : i32
    %c0_i32_0 = arith.constant 0 : i32
    %c0_i32_1 = arith.constant 0 : i32
    return %c0_i32, %c0_i32_0 : i32, i32
  }
  func.func @transform_8(%arg0: i32) -> (i32, i32) {
    %c0_i32 = arith.constant 0 : i32
    %c0_i32_0 = arith.constant 0 : i32
    %c0_i32_1 = arith.constant 0 : i32
    return %c0_i32, %c0_i32_0 : i32, i32
  }
  func.func @transform_9(%arg0: i32) -> (i32, i32) {
    %c0_i32 = arith.constant 0 : i32
    %c0_i32_0 = arith.constant 0 : i32
    %c0_i32_1 = arith.constant 0 : i32
    return %c0_i32, %c0_i32_0 : i32, i32
  }
  func.func @transform_10(%arg0: i32) -> (i32, i32) {
    %c0_i32 = arith.constant 0 : i32
    %c0_i32_0 = arith.constant 0 : i32
    %c0_i32_1 = arith.constant 0 : i32
    return %c0_i32, %c0_i32_0 : i32, i32
  }
  func.func @transform_11(%arg0: i32) -> (i32, i32) {
    %c0_i32 = arith.constant 0 : i32
    %c0_i32_0 = arith.constant 0 : i32
    %c0_i32_1 = arith.constant 0 : i32
    return %c0_i32, %c0_i32_0 : i32, i32
  }
  func.func @transform_12(%arg0: i32) -> (i32, i32, i32) {
    %c0_i32 = arith.constant 0 : i32
    %c0_i32_0 = arith.constant 0 : i32
    %c0_i32_1 = arith.constant 0 : i32
    return %arg0, %c0_i32, %c0_i32_0 : i32, i32, i32
  }
  func.func @transform_13(%arg0: i32) -> (i32, i32, i32) {
    %c0_i32 = arith.constant 0 : i32
    %c0_i32_0 = arith.constant 0 : i32
    %c0_i32_1 = arith.constant 0 : i32
    return %arg0, %c0_i32, %c0_i32_0 : i32, i32, i32
  }
}

</mosaic_0001>

<llo_original>
// kernel: tpu_custom_call.1
$region0: #{tpu_custom_call.1}
  #allocation0 [shape = 'u32[]', space=smem, size = 0x4, offset = 0x4, fixed_abs, tag = 'smem constant byte address 0x4 - core index']
  #allocation1 [shape = 'u32[72,128]{1,0:T(1,128)}', space=vmem, size = 0x9000, scoped, tag = 'internal scratch']
  #allocation2 [shape = 'f32[1]{0:T(128)S(6)}', space=smem, size = 0x200, scoped, tag = 'scoped memory for tpu_custom_call.1']
  %s0 = inlined_call_operand.<no memory space> [shape: f32[1], index: 0, kind: input, shape index: {}]
  %s1 = inlined_call_operand.hbm [shape: f32[4,16,16], index: 1, kind: input, shape index: {}]
  %s2 = inlined_call_operand.hbm [shape: f32[4,16,16], index: 2, kind: input, shape index: {}]
  %s3 = inlined_call_operand.hbm [shape: f32[4,16,16], index: 3, kind: input, shape index: {}]
  %s4 = inlined_call_operand.hbm [shape: f32[4,16,16], index: 4, kind: input, shape index: {}]
  %s5 = inlined_call_operand.hbm [shape: f32[1,16,16], index: 5, kind: input, shape index: {}]
  %s6 = inlined_call_operand.hbm [shape: f32[16,16], index: 6, kind: input, shape index: {}]
  %s7 = inlined_call_operand.hbm [shape: f32[16,16], index: 7, kind: input, shape index: {}]
  %s8 = inlined_call_operand.hbm [shape: f32[16,16], index: 8, kind: input, shape index: {}]
  %s9 = inlined_call_operand.hbm [shape: f32[16,16], index: 9, kind: input, shape index: {}]
  %s10 = inlined_call_operand.hbm [shape: f32[16,16], index: 10, kind: input, shape index: {}]
  %s11 = inlined_call_operand.hbm [shape: f32[16,16], index: 11, kind: input, shape index: {}]
  %s12 = inlined_call_operand.hbm [shape: f32[4,16,16], index: 12, kind: output, shape index: {0}]
  %s13 = inlined_call_operand.hbm [shape: f32[4,16,16], index: 13, kind: output, shape index: {1}]
  %14 = xla_tuple %s12, %s13
  %s15 = sld [smem:[#allocation0]]
  $region133: #{tpu_custom_call.1} parent=0
    _
  %s17 = ssub.s32 1, %s15
  %s18 = scalar_select 0, %s17, %s15
  %19 = sst [smem:[#allocation2]] %s0
  $region1: #{tpu_custom_call.1} parent=0
    #allocation3 [shape = 'u8[32768]{0}', space=vmem, size = 0x8000, scoped, tag = 'input window, operand 1']
    #allocation4 [shape = 's32[2]{0}', space=sflag, size = 0x8, scoped, tag = 'scoped memory for tpu_custom_call.1']
    #allocation5 [shape = 's32[2]{0}', space=sflag, size = 0x8, scoped, tag = 'scoped memory for tpu_custom_call.1']
    #allocation6 [shape = 'u8[32768]{0}', space=vmem, size = 0x8000, scoped, tag = 'input window, operand 2']
    #allocation7 [shape = 's32[2]{0}', space=sflag, size = 0x8, scoped, tag = 'scoped memory for tpu_custom_call.1']
    #allocation8 [shape = 'u8[32768]{0}', space=vmem, size = 0x8000, scoped, tag = 'input window, operand 3']
    #allocation9 [shape = 'u8[32768]{0}', space=vmem, size = 0x8000, scoped, tag = 'input window, operand 4']
    #allocation10 [shape = 's32[2]{0}', space=sflag, size = 0x8, scoped, tag = 'scoped memory for tpu_custom_call.1']
    #allocation11 [shape = 'u8[8192]{0}', space=vmem, size = 0x2000, scoped, tag = 'input window, operand 5, single buffered']
    #allocation12 [shape = 'u8[8192]{0}', space=vmem, size = 0x2000, scoped, tag = 'input window, operand 6, single buffered']
    #allocation13 [shape = 's32[1]{0}', space=sflag, size = 0x4, scoped, tag = 'scoped memory for tpu_custom_call.1']
    #allocation14 [shape = 'u8[8192]{0}', space=vmem, size = 0x2000, scoped, tag = 'input window, operand 7, single buffered']
    #allocation15 [shape = 'u8[8192]{0}', space=vmem, size = 0x2000, scoped, tag = 'input window, operand 8, single buffered']
    #allocation16 [shape = 's32[1]{0}', space=sflag, size = 0x4, scoped, tag = 'scoped memory for tpu_custom_call.1']
    #allocation17 [shape = 'u8[8192]{0}', space=vmem, size = 0x2000, scoped, tag = 'input window, operand 9, single buffered']
    #allocation18 [shape = 'u8[8192]{0}', space=vmem, size = 0x2000, scoped, tag = 'input window, operand 10, single buffered']
    #allocation19 [shape = 's32[1]{0}', space=sflag, size = 0x4, scoped, tag = 'scoped memory for tpu_custom_call.1']
    #allocation20 [shape = 'u8[8192]{0}', space=vmem, size = 0x2000, scoped, tag = 'input window, operand 11, single buffered']
    #allocation21 [shape = 'u8[32768]{0}', space=vmem, size = 0x8000, scoped, tag = 'output window, operand 0']
    #allocation22 [shape = 'u8[32768]{0}', space=vmem, size = 0x8000, scoped, tag = 'output window, operand 1']
    #allocation23 [shape = 's32[2]{0}', space=sflag, size = 0x8, scoped, tag = 'scoped memory for tpu_custom_call.1']
    %20 = vsyncpa [#allocation4], 0
    %s21 = scalar_lea.sflag [#allocation4], 1
    %22 = vsyncpa %s21, 0
    %23 = vsyncpa [#allocation7], 0
    %s24 = scalar_lea.sflag [#allocation7], 1
    %25 = vsyncpa %s24, 0
    %26 = vsyncpa [#allocation10], 0
    %s27 = scalar_lea.sflag [#allocation10], 1
    %28 = vsyncpa %s27, 0
    %29 = vsyncpa [#allocation13], 0
    %30 = vsyncpa [#allocation16], 0
    %31 = vsyncpa [#allocation19], 0
    %32 = vsyncpa [#allocation5], 0
    %s33 = scalar_lea.sflag [#allocation5], 1
    %34 = vsyncpa %s33, 0
    %35 = vsyncpa [#allocation23], 0
    %s36 = scalar_lea.sflag [#allocation23], 1
    %37 = vsyncpa %s36, 0
    loop: start=0, step=1, limit=4
    $region2: #{tpu_custom_call.1} parent=1 // loop_pre_header
      _
    $region3: #{tpu_custom_call.1} parent=1 // loop_header
      %s39 = sphi 0, %s43
      %p40 = scmp.ge.s32.totalorder %s39, 4
      %s47 = sphi 0, %s47
      %s49 = sphi 0, %s47
      %s50 = sphi 0, %s49
      %s64 = sphi 0, %s50
      %s70 = sphi 0, %s72
      %s73 = sphi 0, %s70
      %s74 = sphi 0, %s73
      %s90 = sphi 0, %s74
      %s96 = sphi 0, %s98
      %s99 = sphi 0, %s96
      %s100 = sphi 0, %s99
      %s116 = sphi 0, %s100
      %s122 = sphi 0, %s124
      %s125 = sphi 0, %s122
      %s126 = sphi 0, %s125
      %s142 = sphi 0, %s126
      %s148 = sphi 0, %s150
      %s151 = sphi 0, %s148
      %s152 = sphi 0, %s151
      %s168 = sphi 0, %s152
      %s172 = sphi 0, %s172
      %s174 = sphi 0, %s172
      %s175 = sphi 0, %s174
      %s189 = sphi 0, %s175
      %s193 = sphi 0, %s193
      %s195 = sphi 0, %s193
      %s196 = sphi 0, %s195
      %s210 = sphi 0, %s196
      %s214 = sphi 0, %s214
      %s216 = sphi 0, %s214
      %s217 = sphi 0, %s216
      %s231 = sphi 0, %s217
      %s235 = sphi 0, %s235
      %s237 = sphi 0, %s235
      %s238 = sphi 0, %s237
      %s252 = sphi 0, %s238
      %s256 = sphi 0, %s256
      %s258 = sphi 0, %s256
      %s259 = sphi 0, %s258
      %s273 = sphi 0, %s259
      %s277 = sphi 0, %s277
      %s279 = sphi 0, %s277
      %s280 = sphi 0, %s279
      %s294 = sphi 0, %s280
      %s298 = sphi 0, %s298
      %s300 = sphi 0, %s298
      %s301 = sphi 0, %s300
      %s315 = sphi 0, %s301
      %s321 = sphi 0, %s323
      %s324 = sphi 0, %s321
      %s325 = sphi 0, %s324
      %s341 = sphi 0, %s325
      %s347 = sphi 0, %s349
      %s350 = sphi 0, %s347
      %s351 = sphi 0, %s350
      %s367 = sphi 0, %s351
    $region4: #{tpu_custom_call.1} parent=1 // loop_header_branch
      %42 = sbr.rel (%p40) target = $region8
    $region5: #{tpu_custom_call.1} parent=1 // loop_body
      %s44 = ssub.s32 %s39, 1
      %s45 = ssub.s32 %s39, 2
      %s46 = sadd.s32 %s39, 1
      %s48 = sadd.s32 %s47, 1
      %p51 = scmp.eq.s32.totalorder %s39, 1
      %p52 = scmp.ne.s32.totalorder %s47, %s49
      %p53 = scmp.eq.s32.totalorder %s39, 0
      %p54 = por %p52, %p53
      %p55 = scmp.ne.s32.totalorder %s47, %s49
      %p56 = scmp.eq.s32.totalorder %s44, 1
      %p57 = por %p55, %p56
      %p58 = scmp.ne.s32.totalorder %s49, %s50
      %p59 = scmp.eq.s32.totalorder %s44, 0
      %p60 = por %p58, %p59
      %p61 = scmp.ne.s32.totalorder %s49, %s50
      %p62 = scmp.eq.s32.totalorder %s45, 1
      %p63 = por %p61, %p62
      %p65 = scmp.ne.s32.totalorder %s50, %s64
      %p66 = scmp.eq.s32.totalorder %s45, 0
      %p67 = por %p65, %p66
      %s68 = ssub.s32 %s39, %s46
      %p69 = scmp.eq.s32.totalorder %s68, 0
      %s71 = sadd.s32 %s70, 1
      %s72 = scalar_select %p69, %s70, %s71
      %p75 = pneg %p69
      %p76 = scmp.eq.s32.totalorder %s39, 1
      %p77 = por %p75, %p76
      %p78 = scmp.ne.s32.totalorder %s70, %s73
      %p79 = scmp.eq.s32.totalorder %s39, 0
      %p80 = por %p78, %p79
      %p81 = scmp.ne.s32.totalorder %s70, %s73
      %p82 = scmp.eq.s32.totalorder %s44, 1
      %p83 = por %p81, %p82
      %p84 = scmp.ne.s32.totalorder %s73, %s74
      %p85 = scmp.eq.s32.totalorder %s44, 0
      %p86 = por %p84, %p85
      %p87 = scmp.ne.s32.totalorder %s73, %s74
      %p88 = scmp.eq.s32.totalorder %s45, 1
      %p89 = por %p87, %p88
      %p91 = scmp.ne.s32.totalorder %s74, %s90
      %p92 = scmp.eq.s32.totalorder %s45, 0
      %p93 = por %p91, %p92
      %s94 = ssub.s32 %s39, %s46
      %p95 = scmp.eq.s32.totalorder %s94, 0
      %s97 = sadd.s32 %s96, 1
      %s98 = scalar_select %p95, %s96, %s97
      %p101 = pneg %p95
      %p102 = scmp.eq.s32.totalorder %s39, 1
      %p103 = por %p101, %p102
      %p104 = scmp.ne.s32.totalorder %s96, %s99
      %p105 = scmp.eq.s32.totalorder %s39, 0
      %p106 = por %p104, %p105
      %p107 = scmp.ne.s32.totalorder %s96, %s99
      %p108 = scmp.eq.s32.totalorder %s44, 1
      %p109 = por %p107, %p108
      %p110 = scmp.ne.s32.totalorder %s99, %s100
      %p111 = scmp.eq.s32.totalorder %s44, 0
      %p112 = por %p110, %p111
      %p113 = scmp.ne.s32.totalorder %s99, %s100
      %p114 = scmp.eq.s32.totalorder %s45, 1
      %p115 = por %p113, %p114
      %p117 = scmp.ne.s32.totalorder %s100, %s116
      %p118 = scmp.eq.s32.totalorder %s45, 0
      %p119 = por %p117, %p118
      %s120 = ssub.s32 %s39, %s46
      %p121 = scmp.eq.s32.totalorder %s120, 0
      %s123 = sadd.s32 %s122, 1
      %s124 = scalar_select %p121, %s122, %s123
      %p127 = pneg %p121
      %p128 = scmp.eq.s32.totalorder %s39, 1
      %p129 = por %p127, %p128
      %p130 = scmp.ne.s32.totalorder %s122, %s125
      %p131 = scmp.eq.s32.totalorder %s39, 0
      %p132 = por %p130, %p131
      %p133 = scmp.ne.s32.totalorder %s122, %s125
      %p134 = scmp.eq.s32.totalorder %s44, 1
      %p135 = por %p133, %p134
      %p136 = scmp.ne.s32.totalorder %s125, %s126
      %p137 = scmp.eq.s32.totalorder %s44, 0
      %p138 = por %p136, %p137
      %p139 = scmp.ne.s32.totalorder %s125, %s126
      %p140 = scmp.eq.s32.totalorder %s45, 1
      %p141 = por %p139, %p140
      %p143 = scmp.ne.s32.totalorder %s126, %s142
      %p144 = scmp.eq.s32.totalorder %s45, 0
      %p145 = por %p143, %p144
      %s146 = ssub.s32 %s39, %s46
      %p147 = scmp.eq.s32.totalorder %s146, 0
      %s149 = sadd.s32 %s148, 1
      %s150 = scalar_select %p147, %s148, %s149
      %p153 = pneg %p147
      %p154 = scmp.eq.s32.totalorder %s39, 1
      %p155 = por %p153, %p154
      %p156 = scmp.ne.s32.totalorder %s148, %s151
      %p157 = scmp.eq.s32.totalorder %s39, 0
      %p158 = por %p156, %p157
      %p159 = scmp.ne.s32.totalorder %s148, %s151
      %p160 = scmp.eq.s32.totalorder %s44, 1
      %p161 = por %p159, %p160
      %p162 = scmp.ne.s32.totalorder %s151, %s152
      %p163 = scmp.eq.s32.totalorder %s44, 0
      %p164 = por %p162, %p163
      %p165 = scmp.ne.s32.totalorder %s151, %s152
      %p166 = scmp.eq.s32.totalorder %s45, 1
      %p167 = por %p165, %p166
      %p169 = scmp.ne.s32.totalorder %s152, %s168
      %p170 = scmp.eq.s32.totalorder %s45, 0
      %p171 = por %p169, %p170
      %s173 = sadd.s32 %s172, 1
      %p176 = scmp.eq.s32.totalorder %s39, 1
      %p177 = scmp.ne.s32.totalorder %s172, %s174
      %p178 = scmp.eq.s32.totalorder %s39, 0
      %p179 = por %p177, %p178
      %p180 = scmp.ne.s32.totalorder %s172, %s174
      %p181 = scmp.eq.s32.totalorder %s44, 1
      %p182 = por %p180, %p181
      %p183 = scmp.ne.s32.totalorder %s174, %s175
      %p184 = scmp.eq.s32.totalorder %s44, 0
      %p185 = por %p183, %p184
      %p186 = scmp.ne.s32.totalorder %s174, %s175
      %p187 = scmp.eq.s32.totalorder %s45, 1
      %p188 = por %p186, %p187
      %p190 = scmp.ne.s32.totalorder %s175, %s189
      %p191 = scmp.eq.s32.totalorder %s45, 0
      %p192 = por %p190, %p191
      %s194 = sadd.s32 %s193, 1
      %p197 = scmp.eq.s32.totalorder %s39, 1
      %p198 = scmp.ne.s32.totalorder %s193, %s195
      %p199 = scmp.eq.s32.totalorder %s39, 0
      %p200 = por %p198, %p199
      %p201 = scmp.ne.s32.totalorder %s193, %s195
      %p202 = scmp.eq.s32.totalorder %s44, 1
      %p203 = por %p201, %p202
      %p204 = scmp.ne.s32.totalorder %s195, %s196
      %p205 = scmp.eq.s32.totalorder %s44, 0
      %p206 = por %p204, %p205
      %p207 = scmp.ne.s32.totalorder %s195, %s196
      %p208 = scmp.eq.s32.totalorder %s45, 1
      %p209 = por %p207, %p208
      %p211 = scmp.ne.s32.totalorder %s196, %s210
      %p212 = scmp.eq.s32.totalorder %s45, 0
      %p213 = por %p211, %p212
      %s215 = sadd.s32 %s214, 1
      %p218 = scmp.eq.s32.totalorder %s39, 1
      %p219 = scmp.ne.s32.totalorder %s214, %s216
      %p220 = scmp.eq.s32.totalorder %s39, 0
      %p221 = por %p219, %p220
      %p222 = scmp.ne.s32.totalorder %s214, %s216
      %p223 = scmp.eq.s32.totalorder %s44, 1
      %p224 = por %p222, %p223
      %p225 = scmp.ne.s32.totalorder %s216, %s217
      %p226 = scmp.eq.s32.totalorder %s44, 0
      %p227 = por %p225, %p226
      %p228 = scmp.ne.s32.totalorder %s216, %s217
      %p229 = scmp.eq.s32.totalorder %s45, 1
      %p230 = por %p228, %p229
      %p232 = scmp.ne.s32.totalorder %s217, %s231
      %p233 = scmp.eq.s32.totalorder %s45, 0
      %p234 = por %p232, %p233
      %s236 = sadd.s32 %s235, 1
      %p239 = scmp.eq.s32.totalorder %s39, 1
      %p240 = scmp.ne.s32.totalorder %s235, %s237
      %p241 = scmp.eq.s32.totalorder %s39, 0
      %p242 = por %p240, %p241
      %p243 = scmp.ne.s32.totalorder %s235, %s237
      %p244 = scmp.eq.s32.totalorder %s44, 1
      %p245 = por %p243, %p244
      %p246 = scmp.ne.s32.totalorder %s237, %s238
      %p247 = scmp.eq.s32.totalorder %s44, 0
      %p248 = por %p246, %p247
      %p249 = scmp.ne.s32.totalorder %s237, %s238
      %p250 = scmp.eq.s32.totalorder %s45, 1
      %p251 = por %p249, %p250
      %p253 = scmp.ne.s32.totalorder %s238, %s252
      %p254 = scmp.eq.s32.totalorder %s45, 0
      %p255 = por %p253, %p254
      %s257 = sadd.s32 %s256, 1
      %p260 = scmp.eq.s32.totalorder %s39, 1
      %p261 = scmp.ne.s32.totalorder %s256, %s258
      %p262 = scmp.eq.s32.totalorder %s39, 0
      %p263 = por %p261, %p262
      %p264 = scmp.ne.s32.totalorder %s256, %s258
      %p265 = scmp.eq.s32.totalorder %s44, 1
      %p266 = por %p264, %p265
      %p267 = scmp.ne.s32.totalorder %s258, %s259
      %p268 = scmp.eq.s32.totalorder %s44, 0
      %p269 = por %p267, %p268
      %p270 = scmp.ne.s32.totalorder %s258, %s259
      %p271 = scmp.eq.s32.totalorder %s45, 1
      %p272 = por %p270, %p271
      %p274 = scmp.ne.s32.totalorder %s259, %s273
      %p275 = scmp.eq.s32.totalorder %s45, 0
      %p276 = por %p274, %p275
      %s278 = sadd.s32 %s277, 1
      %p281 = scmp.eq.s32.totalorder %s39, 1
      %p282 = scmp.ne.s32.totalorder %s277, %s279
      %p283 = scmp.eq.s32.totalorder %s39, 0
      %p284 = por %p282, %p283
      %p285 = scmp.ne.s32.totalorder %s277, %s279
      %p286 = scmp.eq.s32.totalorder %s44, 1
      %p287 = por %p285, %p286
      %p288 = scmp.ne.s32.totalorder %s279, %s280
      %p289 = scmp.eq.s32.totalorder %s44, 0
      %p290 = por %p288, %p289
      %p291 = scmp.ne.s32.totalorder %s279, %s280
      %p292 = scmp.eq.s32.totalorder %s45, 1
      %p293 = por %p291, %p292
      %p295 = scmp.ne.s32.totalorder %s280, %s294
      %p296 = scmp.eq.s32.totalorder %s45, 0
      %p297 = por %p295, %p296
      %s299 = sadd.s32 %s298, 1
      %p302 = scmp.eq.s32.totalorder %s39, 1
      %p303 = scmp.ne.s32.totalorder %s298, %s300
      %p304 = scmp.eq.s32.totalorder %s39, 0
      %p305 = por %p303, %p304
      %p306 = scmp.ne.s32.totalorder %s298, %s300
      %p307 = scmp.eq.s32.totalorder %s44, 1
      %p308 = por %p306, %p307
      %p309 = scmp.ne.s32.totalorder %s300, %s301
      %p310 = scmp.eq.s32.totalorder %s44, 0
      %p311 = por %p309, %p310
      %p312 = scmp.ne.s32.totalorder %s300, %s301
      %p313 = scmp.eq.s32.totalorder %s45, 1
      %p314 = por %p312, %p313
      %p316 = scmp.ne.s32.totalorder %s301, %s315
      %p317 = scmp.eq.s32.totalorder %s45, 0
      %p318 = por %p316, %p317
      %s319 = ssub.s32 %s39, %s46
      %p320 = scmp.eq.s32.totalorder %s319, 0
      %s322 = sadd.s32 %s321, 1
      %s323 = scalar_select %p320, %s321, %s322
      %p326 = pneg %p320
      %p327 = scmp.eq.s32.totalorder %s39, 1
      %p328 = por %p326, %p327
      %p329 = scmp.ne.s32.totalorder %s321, %s324
      %p330 = scmp.eq.s32.totalorder %s39, 0
      %p331 = por %p329, %p330
      %p332 = scmp.ne.s32.totalorder %s321, %s324
      %p333 = scmp.eq.s32.totalorder %s44, 1
      %p334 = por %p332, %p333
      %p335 = scmp.ne.s32.totalorder %s324, %s325
      %p336 = scmp.eq.s32.totalorder %s44, 0
      %p337 = por %p335, %p336
      %p338 = scmp.ne.s32.totalorder %s324, %s325
      %p339 = scmp.eq.s32.totalorder %s45, 1
      %p340 = por %p338, %p339
      %p342 = scmp.ne.s32.totalorder %s325, %s341
      %p343 = scmp.eq.s32.totalorder %s45, 0
      %p344 = por %p342, %p343
      %s345 = ssub.s32 %s39, %s46
      %p346 = scmp.eq.s32.totalorder %s345, 0
      %s348 = sadd.s32 %s347, 1
      %s349 = scalar_select %p346, %s347, %s348
      %p352 = pneg %p346
      %p353 = scmp.eq.s32.totalorder %s39, 1
      %p354 = por %p352, %p353
      %p355 = scmp.ne.s32.totalorder %s347, %s350
      %p356 = scmp.eq.s32.totalorder %s39, 0
      %p357 = por %p355, %p356
      %p358 = scmp.ne.s32.totalorder %s347, %s350
      %p359 = scmp.eq.s32.totalorder %s44, 1
      %p360 = por %p358, %p359
      %p361 = scmp.ne.s32.totalorder %s350, %s351
      %p362 = scmp.eq.s32.totalorder %s44, 0
      %p363 = por %p361, %p362
      %p364 = scmp.ne.s32.totalorder %s350, %s351
      %p365 = scmp.eq.s32.totalorder %s45, 1
      %p366 = por %p364, %p365
      %p368 = scmp.ne.s32.totalorder %s351, %s367
      %p369 = scmp.eq.s32.totalorder %s45, 0
      %p370 = por %p368, %p369
      %p371 = scmp.le.s32.totalorder 1, %s39
      %p372 = scmp.lt.s32.totalorder %s39, 3
      %p373 = pnand %p371, %p372
      %p374 = pneg %p373
      // Predicated region
      $region9: #{tpu_custom_call.1} parent=5 // pred_check
        _
      $region10: #{tpu_custom_call.1} parent=5 // pred_check_branch
        %376 = sbr.rel (%p373) target = $region12
      $region11: #{tpu_custom_call.1} parent=5 // pred_region
        %s377 = ssub.s32 %s39, 1
        // Predicated region
        $region13: #{tpu_custom_call.1} parent=11 // pred_check
          %p378 = pneg %p60
        $region14: #{tpu_custom_call.1} parent=11 // pred_check_branch
          %380 = sbr.rel (%p378) target = $region16
        $region15: #{tpu_custom_call.1} parent=11 // pred_region
          _
        $region16: #{tpu_custom_call.1} parent=11 // pred_fallthru
          _
        // Predicated region
        $region17: #{tpu_custom_call.1} parent=11 // pred_check
          %p381 = pneg %p185
        $region18: #{tpu_custom_call.1} parent=11 // pred_check_branch
          %383 = sbr.rel (%p381) target = $region20
        $region19: #{tpu_custom_call.1} parent=11 // pred_region
          %385 = vsyncadd [#allocation10], 0
          %s386 = sshll.u32 %s5, 4
          %s387 = int_to_ptr.hbm [resolvable:$true] %s386
          %s388 = sshll.u32 [#allocation11], 4
          %s389 = int_to_ptr.vmem [resolvable:$true] %s388
          %394 = dma.hbm_to_vmem [thread:$0]  %s387, 256, %s389, [#allocation10], 128, 128, 8
        $region20: #{tpu_custom_call.1} parent=11 // pred_fallthru
          _
        // Predicated region
        $region21: #{tpu_custom_call.1} parent=11 // pred_check
          %p395 = pneg %p206
        $region22: #{tpu_custom_call.1} parent=11 // pred_check_branch
          %397 = sbr.rel (%p395) target = $region24
        $region23: #{tpu_custom_call.1} parent=11 // pred_region
          %399 = vsyncadd [#allocation13], 0
          %s400 = sshll.u32 %s6, 4
          %s401 = int_to_ptr.hbm [resolvable:$true] %s400
          %s402 = sshll.u32 [#allocation12], 4
          %s403 = int_to_ptr.vmem [resolvable:$true] %s402
          %408 = dma.hbm_to_vmem [thread:$0]  %s401, 256, %s403, [#allocation13], 128, 128, 8
        $region24: #{tpu_custom_call.1} parent=11 // pred_fallthru
          _
        // Predicated region
        $region25: #{tpu_custom_call.1} parent=11 // pred_check
          %p409 = pneg %p227
        $region26: #{tpu_custom_call.1} parent=11 // pred_check_branch
          %411 = sbr.rel (%p409) target = $region28
        $region27: #{tpu_custom_call.1} parent=11 // pred_region
          %413 = vsyncadd [#allocation13], 0
          %s414 = sshll.u32 %s7, 4
          %s415 = int_to_ptr.hbm [resolvable:$true] %s414
          %s416 = sshll.u32 [#allocation14], 4
          %s417 = int_to_ptr.vmem [resolvable:$true] %s416
          %422 = dma.hbm_to_vmem [thread:$0]  %s415, 256, %s417, [#allocation13], 128, 128, 8
        $region28: #{tpu_custom_call.1} parent=11 // pred_fallthru
          _
        // Predicated region
        $region29: #{tpu_custom_call.1} parent=11 // pred_check
          %p423 = pneg %p248
        $region30: #{tpu_custom_call.1} parent=11 // pred_check_branch
          %425 = sbr.rel (%p423) target = $region32
        $region31: #{tpu_custom_call.1} parent=11 // pred_region
          %427 = vsyncadd [#allocation16], 0
          %s428 = sshll.u32 %s8, 4
          %s429 = int_to_ptr.hbm [resolvable:$true] %s428
          %s430 = sshll.u32 [#allocation15], 4
          %s431 = int_to_ptr.vmem [resolvable:$true] %s430
          %436 = dma.hbm_to_vmem [thread:$0]  %s429, 256, %s431, [#allocation16], 128, 128, 8
        $region32: #{tpu_custom_call.1} parent=11 // pred_fallthru
          _
        // Predicated region
        $region33: #{tpu_custom_call.1} parent=11 // pred_check
          %p437 = pneg %p269
        $region34: #{tpu_custom_call.1} parent=11 // pred_check_branch
          %439 = sbr.rel (%p437) target = $region36
        $region35: #{tpu_custom_call.1} parent=11 // pred_region
          %441 = vsyncadd [#allocation16], 0
          %s442 = sshll.u32 %s9, 4
          %s443 = int_to_ptr.hbm [resolvable:$true] %s442
          %s444 = sshll.u32 [#allocation17], 4
          %s445 = int_to_ptr.vmem [resolvable:$true] %s444
          %450 = dma.hbm_to_vmem [thread:$0]  %s443, 256, %s445, [#allocation16], 128, 128, 8
        $region36: #{tpu_custom_call.1} parent=11 // pred_fallthru
          _
        // Predicated region
        $region37: #{tpu_custom_call.1} parent=11 // pred_check
          %p451 = pneg %p290
        $region38: #{tpu_custom_call.1} parent=11 // pred_check_branch
          %453 = sbr.rel (%p451) target = $region40
        $region39: #{tpu_custom_call.1} parent=11 // pred_region
          %455 = vsyncadd [#allocation19], 0
          %s456 = sshll.u32 %s10, 4
          %s457 = int_to_ptr.hbm [resolvable:$true] %s456
          %s458 = sshll.u32 [#allocation18], 4
          %s459 = int_to_ptr.vmem [resolvable:$true] %s458
          %464 = dma.hbm_to_vmem [thread:$0]  %s457, 256, %s459, [#allocation19], 128, 128, 8
        $region40: #{tpu_custom_call.1} parent=11 // pred_fallthru
          _
        // Predicated region
        $region41: #{tpu_custom_call.1} parent=11 // pred_check
          %p465 = pneg %p311
        $region42: #{tpu_custom_call.1} parent=11 // pred_check_branch
          %467 = sbr.rel (%p465) target = $region44
        $region43: #{tpu_custom_call.1} parent=11 // pred_region
          %469 = vsyncadd [#allocation19], 0
          %s470 = sshll.u32 %s11, 4
          %s471 = int_to_ptr.hbm [resolvable:$true] %s470
          %s472 = sshll.u32 [#allocation20], 4
          %s473 = int_to_ptr.vmem [resolvable:$true] %s472
          %478 = dma.hbm_to_vmem [thread:$0]  %s471, 256, %s473, [#allocation19], 128, 128, 8
        $region44: #{tpu_custom_call.1} parent=11 // pred_fallthru
          _
      $region12: #{tpu_custom_call.1} parent=5 // pred_fallthru
        _
      %p479 = scmp.lt.s32.totalorder %s39, 2
      // Predicated region
      $region45: #{tpu_custom_call.1} parent=5 // pred_check
        %p480 = pneg %p479
      $region46: #{tpu_custom_call.1} parent=5 // pred_check_branch
        %482 = sbr.rel (%p480) target = $region48
      $region47: #{tpu_custom_call.1} parent=5 // pred_region
        // Predicated region
        $region49: #{tpu_custom_call.1} parent=47 // pred_check
          %p483 = pneg %p80
        $region50: #{tpu_custom_call.1} parent=47 // pred_check_branch
          %485 = sbr.rel (%p483) target = $region52
        $region51: #{tpu_custom_call.1} parent=47 // pred_region
          %s486 = sand.u32 %s70, 1
          %s487 = scalar_lea.sflag [#allocation4], %s486
          %s488 = sand.u32 %s70, 1
          %s489 = smul.addr %s488, 32
          %s490 = scalar_lea.vmem [#allocation3], %s489
          %s491 = smul.u32 2, %s39
          %493 = vsyncadd %s487, 0
          %s494 = smul.addr %s491, 2
          %s495 = smul.addr %s494, 8
          %s496 = scalar_lea.hbm %s1, %s495
          %s497 = sshll.u32 %s496, 4
          %s498 = int_to_ptr.hbm [resolvable:$true] %s497
          %s499 = sshll.u32 %s490, 4
          %s500 = int_to_ptr.vmem [resolvable:$true] %s499
          %505 = dma.hbm_to_vmem [thread:$0]  %s498, 512, %s500, %s487, 128, 128, 8
        $region52: #{tpu_custom_call.1} parent=47 // pred_fallthru
          _
        // Predicated region
        $region53: #{tpu_custom_call.1} parent=47 // pred_check
          %p506 = pneg %p106
        $region54: #{tpu_custom_call.1} parent=47 // pred_check_branch
          %508 = sbr.rel (%p506) target = $region56
        $region55: #{tpu_custom_call.1} parent=47 // pred_region
          %s509 = sand.u32 %s39, 1
          %s510 = scalar_lea.sflag [#allocation7], %s509
          %s511 = sand.u32 %s96, 1
          %s512 = smul.addr %s511, 32
          %s513 = scalar_lea.vmem [#allocation6], %s512
          %s514 = smul.u32 2, %s39
          %516 = vsyncadd %s510, 0
          %s517 = smul.addr %s514, 2
          %s518 = smul.addr %s517, 8
          %s519 = scalar_lea.hbm %s2, %s518
          %s520 = sshll.u32 %s519, 4
          %s521 = int_to_ptr.hbm [resolvable:$true] %s520
          %s522 = sshll.u32 %s513, 4
          %s523 = int_to_ptr.vmem [resolvable:$true] %s522
          %528 = dma.hbm_to_vmem [thread:$0]  %s521, 512, %s523, %s510, 128, 128, 8
        $region56: #{tpu_custom_call.1} parent=47 // pred_fallthru
          _
        // Predicated region
        $region57: #{tpu_custom_call.1} parent=47 // pred_check
          %p529 = pneg %p132
        $region58: #{tpu_custom_call.1} parent=47 // pred_check_branch
          %531 = sbr.rel (%p529) target = $region60
        $region59: #{tpu_custom_call.1} parent=47 // pred_region
          %s532 = sand.u32 %s39, 1
          %s533 = scalar_lea.sflag [#allocation7], %s532
          %s534 = sand.u32 %s122, 1
          %s535 = smul.addr %s534, 32
          %s536 = scalar_lea.vmem [#allocation8], %s535
          %s537 = smul.u32 2, %s39
          %539 = vsyncadd %s533, 0
          %s540 = smul.addr %s537, 2
          %s541 = smul.addr %s540, 8
          %s542 = scalar_lea.hbm %s3, %s541
          %s543 = sshll.u32 %s542, 4
          %s544 = int_to_ptr.hbm [resolvable:$true] %s543
          %s545 = sshll.u32 %s536, 4
          %s546 = int_to_ptr.vmem [resolvable:$true] %s545
          %551 = dma.hbm_to_vmem [thread:$0]  %s544, 512, %s546, %s533, 128, 128, 8
        $region60: #{tpu_custom_call.1} parent=47 // pred_fallthru
          _
        // Predicated region
        $region61: #{tpu_custom_call.1} parent=47 // pred_check
          %p552 = pneg %p158
        $region62: #{tpu_custom_call.1} parent=47 // pred_check_branch
          %554 = sbr.rel (%p552) target = $region64
        $region63: #{tpu_custom_call.1} parent=47 // pred_region
          %s555 = sand.u32 %s39, 1
          %s556 = scalar_lea.sflag [#allocation10], %s555
          %s557 = sand.u32 %s148, 1
          %s558 = smul.addr %s557, 32
          %s559 = scalar_lea.vmem [#allocation9], %s558
          %s560 = smul.u32 2, %s39
          %562 = vsyncadd %s556, 0
          %s563 = smul.addr %s560, 2
          %s564 = smul.addr %s563, 8
          %s565 = scalar_lea.hbm %s4, %s564
          %s566 = sshll.u32 %s565, 4
          %s567 = int_to_ptr.hbm [resolvable:$true] %s566
          %s568 = sshll.u32 %s559, 4
          %s569 = int_to_ptr.vmem [resolvable:$true] %s568
          %574 = dma.hbm_to_vmem [thread:$0]  %s567, 512, %s569, %s556, 128, 128, 8
        $region64: #{tpu_custom_call.1} parent=47 // pred_fallthru
          _
      $region48: #{tpu_custom_call.1} parent=5 // pred_fallthru
        _
      %p575 = scmp.le.s32.totalorder 1, %s39
      %p576 = scmp.lt.s32.totalorder %s39, 3
      %p577 = pnand %p575, %p576
      %p578 = pneg %p577
      // Predicated region
      $region65: #{tpu_custom_call.1} parent=5 // pred_check
        _
      $region66: #{tpu_custom_call.1} parent=5 // pred_check_branch
        %580 = sbr.rel (%p577) target = $region68
      $region67: #{tpu_custom_call.1} parent=5 // pred_region
        %s581 = ssub.s32 %s39, 1
        %s582 = sand.u32 %s73, 1
        %s583 = scalar_lea.sflag [#allocation4], %s582
        %s584 = sand.u32 %s73, 1
        %s585 = smul.addr %s584, 32
        %s586 = scalar_lea.vmem [#allocation3], %s585
        // Predicated region
        $region69: #{tpu_custom_call.1} parent=67 // pred_check
          %p587 = pneg %p86
        $region70: #{tpu_custom_call.1} parent=67 // pred_check_branch
          %589 = sbr.rel (%p587) target = $region72
        $region71: #{tpu_custom_call.1} parent=67 // pred_region
          %591 = dma.done %s583, 512
        $region72: #{tpu_custom_call.1} parent=67 // pred_fallthru
          _
        %s592 = sand.u32 %s44, 1
        %s593 = scalar_lea.sflag [#allocation7], %s592
        %s594 = sand.u32 %s99, 1
        %s595 = smul.addr %s594, 32
        %s596 = scalar_lea.vmem [#allocation6], %s595
        // Predicated region
        $region73: #{tpu_custom_call.1} parent=67 // pred_check
          %p597 = pneg %p112
        $region74: #{tpu_custom_call.1} parent=67 // pred_check_branch
          %599 = sbr.rel (%p597) target = $region76
        $region75: #{tpu_custom_call.1} parent=67 // pred_region
          %601 = dma.done %s593, 512
        $region76: #{tpu_custom_call.1} parent=67 // pred_fallthru
          _
        %s602 = sand.u32 %s44, 1
        %s603 = scalar_lea.sflag [#allocation7], %s602
        %s604 = sand.u32 %s125, 1
        %s605 = smul.addr %s604, 32
        %s606 = scalar_lea.vmem [#allocation8], %s605
        // Predicated region
        $region77: #{tpu_custom_call.1} parent=67 // pred_check
          %p607 = pneg %p138
        $region78: #{tpu_custom_call.1} parent=67 // pred_check_branch
          %609 = sbr.rel (%p607) target = $region80
        $region79: #{tpu_custom_call.1} parent=67 // pred_region
          %611 = dma.done %s603, 512
        $region80: #{tpu_custom_call.1} parent=67 // pred_fallthru
          _
        %s612 = sand.u32 %s44, 1
        %s613 = scalar_lea.sflag [#allocation10], %s612
        %s614 = sand.u32 %s151, 1
        %s615 = smul.addr %s614, 32
        %s616 = scalar_lea.vmem [#allocation9], %s615
        // Predicated region
        $region81: #{tpu_custom_call.1} parent=67 // pred_check
          %p617 = pneg %p164
        $region82: #{tpu_custom_call.1} parent=67 // pred_check_branch
          %619 = sbr.rel (%p617) target = $region84
        $region83: #{tpu_custom_call.1} parent=67 // pred_region
          %621 = dma.done %s613, 512
        $region84: #{tpu_custom_call.1} parent=67 // pred_fallthru
          _
        // Predicated region
        $region85: #{tpu_custom_call.1} parent=67 // pred_check
          %p622 = pneg %p185
        $region86: #{tpu_custom_call.1} parent=67 // pred_check_branch
          %624 = sbr.rel (%p622) target = $region88
        $region87: #{tpu_custom_call.1} parent=67 // pred_region
          %626 = dma.done [#allocation10], 256
        $region88: #{tpu_custom_call.1} parent=67 // pred_fallthru
          _
        // Predicated region
        $region89: #{tpu_custom_call.1} parent=67 // pred_check
          %p627 = pneg %p206
        $region90: #{tpu_custom_call.1} parent=67 // pred_check_branch
          %629 = sbr.rel (%p627) target = $region92
        $region91: #{tpu_custom_call.1} parent=67 // pred_region
          %631 = dma.done [#allocation13], 256
        $region92: #{tpu_custom_call.1} parent=67 // pred_fallthru
          _
        // Predicated region
        $region93: #{tpu_custom_call.1} parent=67 // pred_check
          %p632 = pneg %p227
        $region94: #{tpu_custom_call.1} parent=67 // pred_check_branch
          %634 = sbr.rel (%p632) target = $region96
        $region95: #{tpu_custom_call.1} parent=67 // pred_region
          %636 = dma.done [#allocation13], 256
        $region96: #{tpu_custom_call.1} parent=67 // pred_fallthru
          _
        // Predicated region
        $region97: #{tpu_custom_call.1} parent=67 // pred_check
          %p637 = pneg %p248
        $region98: #{tpu_custom_call.1} parent=67 // pred_check_branch
          %639 = sbr.rel (%p637) target = $region100
        $region99: #{tpu_custom_call.1} parent=67 // pred_region
          %641 = dma.done [#allocation16], 256
        $region100: #{tpu_custom_call.1} parent=67 // pred_fallthru
          _
        // Predicated region
        $region101: #{tpu_custom_call.1} parent=67 // pred_check
          %p642 = pneg %p269
        $region102: #{tpu_custom_call.1} parent=67 // pred_check_branch
          %644 = sbr.rel (%p642) target = $region104
        $region103: #{tpu_custom_call.1} parent=67 // pred_region
          %646 = dma.done [#allocation16], 256
        $region104: #{tpu_custom_call.1} parent=67 // pred_fallthru
          _
        // Predicated region
        $region105: #{tpu_custom_call.1} parent=67 // pred_check
          %p647 = pneg %p290
        $region106: #{tpu_custom_call.1} parent=67 // pred_check_branch
          %649 = sbr.rel (%p647) target = $region108
        $region107: #{tpu_custom_call.1} parent=67 // pred_region
          %651 = dma.done [#allocation19], 256
        $region108: #{tpu_custom_call.1} parent=67 // pred_fallthru
          _
        // Predicated region
        $region109: #{tpu_custom_call.1} parent=67 // pred_check
          %p652 = pneg %p311
        $region110: #{tpu_custom_call.1} parent=67 // pred_check_branch
          %654 = sbr.rel (%p652) target = $region112
        $region111: #{tpu_custom_call.1} parent=67 // pred_region
          %656 = dma.done [#allocation19], 256
        $region112: #{tpu_custom_call.1} parent=67 // pred_fallthru
          _
        %p657 = pneg %p60
        %p658 = pneg %p57
        %s659 = sand.u32 %s73, 1
        %s660 = scalar_lea.sflag [#allocation4], %s659
        %s661 = sand.u32 %s73, 1
        %s662 = smul.addr %s661, 32
        %s663 = scalar_lea.vmem [#allocation3], %s662
        %p664 = pneg %p86
        %p665 = pneg %p83
        %s666 = sand.u32 %s44, 1
        %s667 = scalar_lea.sflag [#allocation7], %s666
        %s668 = sand.u32 %s99, 1
        %s669 = smul.addr %s668, 32
        %s670 = scalar_lea.vmem [#allocation6], %s669
        %p671 = pneg %p112
        %p672 = pneg %p109
        %s673 = sand.u32 %s44, 1
        %s674 = scalar_lea.sflag [#allocation7], %s673
        %s675 = sand.u32 %s125, 1
        %s676 = smul.addr %s675, 32
        %s677 = scalar_lea.vmem [#allocation8], %s676
        %p678 = pneg %p138
        %p679 = pneg %p135
        %s680 = sand.u32 %s44, 1
        %s681 = scalar_lea.sflag [#allocation10], %s680
        %s682 = sand.u32 %s151, 1
        %s683 = smul.addr %s682, 32
        %s684 = scalar_lea.vmem [#allocation9], %s683
        %p685 = pneg %p164
        %p686 = pneg %p161
        %p687 = pneg %p185
        %p688 = pneg %p182
        %p689 = pneg %p206
        %p690 = pneg %p203
        %p691 = pneg %p227
        %p692 = pneg %p224
        %p693 = pneg %p248
        %p694 = pneg %p245
        %p695 = pneg %p269
        %p696 = pneg %p266
        %p697 = pneg %p290
        %p698 = pneg %p287
        %p699 = pneg %p311
        %p700 = pneg %p308
        %p701 = pneg %p337
        %p702 = pneg %p334
        %s703 = sand.u32 %s324, 1
        %s704 = scalar_lea.sflag [#allocation5], %s703
        %s705 = sand.u32 %s324, 1
        %s706 = smul.addr %s705, 32
        %s707 = scalar_lea.vmem [#allocation21], %s706
        %p708 = pneg %p363
        %p709 = pneg %p360
        %s710 = sand.u32 %s350, 1
        %s711 = scalar_lea.sflag [#allocation23], %s710
        %s712 = sand.u32 %s350, 1
        %s713 = smul.addr %s712, 32
        %s714 = scalar_lea.vmem [#allocation22], %s713
        %s715 = smul.u32 2, %s44
        %s716 = smul.u32 2, %s44
        %s717 = smul.u32 2, %s44
        %s718 = smul.u32 2, %s44
        %s719 = smul.u32 2, %s44
        %s720 = smul.u32 2, %s44
        %s721 = sld [smem:[#allocation2]]
        %v722 = vld [vmem:[#allocation12] sm:$0xff]
        %v723 = vld [vmem:[#allocation12 + $0x8] sm:$0xff]
        %v724 = vld [vmem:[#allocation14] sm:$0xff]
        %v725 = vld [vmem:[#allocation14 + $0x8] sm:$0xff]
        %v726 = vld [vmem:[#allocation15] sm:$0xff]
        %v727 = vld [vmem:[#allocation15 + $0x8] sm:$0xff]
        %v728 = vld [vmem:[#allocation17] sm:$0xff]
        %v729 = vld [vmem:[#allocation17 + $0x8] sm:$0xff]
        %v730 = vld [vmem:[#allocation18] sm:$0xff]
        %v731 = vld [vmem:[#allocation18 + $0x8] sm:$0xff]
        %v732 = vld [vmem:[#allocation20] sm:$0xff]
        %v733 = vld [vmem:[#allocation20 + $0x8] sm:$0xff]
        %v734 = vld [vmem:[%s586] sm:$0xff]
        %v735 = vld [vmem:[%s586 + $0x8] sm:$0xff]
        %v736 = vld [vmem:[%s586 + $0x10] sm:$0xff]
        %v737 = vld [vmem:[%s586 + $0x18] sm:$0xff]
        %v738 = vld [vmem:[%s596] sm:$0xff]
        %v739 = vld [vmem:[%s596 + $0x8] sm:$0xff]
        %v740 = vld [vmem:[%s596 + $0x10] sm:$0xff]
        %v741 = vld [vmem:[%s596 + $0x18] sm:$0xff]
        %vm742 = vcmask 130048
        %v744 = vsel %vm742, %v734, 0
        %v747 = vsel %vm742, %v735, 0
        %v750 = vsel %vm742, %v736, 0
        %v753 = vsel %vm742, %v737, 0
        %755 = vmatpush.msra.mxu0 0.0
        %756 = vmatpush.msra.mxu0 0.0
        %757 = vmatpush.msra.mxu0 0.0
        %758 = vmatpush.msra.mxu0 0.0
        %759 = vmatpush.msra.mxu0 0.0
        %760 = vmatpush.msra.mxu0 0.0
        %761 = vmatpush.msra.mxu0 0.0
        %762 = vmatpush.msra.mxu0 0.0
        %763 = vmatpush.msra.mxu0 0.0
        %764 = vmatpush.msra.mxu0 0.0
        %765 = vmatpush.msra.mxu0 0.0
        %766 = vmatpush.msra.mxu0 0.0
        %767 = vmatpush.msra.mxu0 0.0
        %768 = vmatpush.msra.mxu0 0.0
        %769 = vmatpush.msra.mxu0 %v729
        %770 = vmatpush.msra.mxu0 %v728
        %771 = vmatmul.f32.gmra.mxu0 %v744
        %v772 = vpop.f32.mrf.mxu0
        %v773 = vadd.f32 0.0, %v772
        %774 = vmatmul.f32.gmra.mxu0 %v747
        %v775 = vpop.f32.mrf.mxu0
        %v776 = vadd.f32 0.0, %v775
        %777 = vmatmul.f32.gmra.mxu0 %v750
        %v778 = vpop.f32.mrf.mxu0
        %v779 = vadd.f32 0.0, %v778
        %780 = vmatmul.f32.gmra.mxu0 %v753
        %v781 = vpop.f32.mrf.mxu0
        %v782 = vadd.f32 0.0, %v781
        %783 = vdwg.mxu0
        %v785 = vsel %vm742, %v738, 0
        %v788 = vsel %vm742, %v739, 0
        %v791 = vsel %vm742, %v740, 0
        %v794 = vsel %vm742, %v741, 0
        %796 = vmatpush.msra.mxu0 0.0
        %797 = vmatpush.msra.mxu0 0.0
        %798 = vmatpush.msra.mxu0 0.0
        %799 = vmatpush.msra.mxu0 0.0
        %800 = vmatpush.msra.mxu0 0.0
        %801 = vmatpush.msra.mxu0 0.0
        %802 = vmatpush.msra.mxu0 0.0
        %803 = vmatpush.msra.mxu0 0.0
        %804 = vmatpush.msra.mxu0 0.0
        %805 = vmatpush.msra.mxu0 0.0
        %806 = vmatpush.msra.mxu0 0.0
        %807 = vmatpush.msra.mxu0 0.0
        %808 = vmatpush.msra.mxu0 0.0
        %809 = vmatpush.msra.mxu0 0.0
        %810 = vmatpush.msra.mxu0 %v731
        %811 = vmatpush.msra.mxu0 %v730
        %812 = vmatmul.f32.gmra.mxu0 %v785
        %v813 = vpop.f32.mrf.mxu0
        %v814 = vadd.f32 0.0, %v813
        %815 = vmatmul.f32.gmra.mxu0 %v788
        %v816 = vpop.f32.mrf.mxu0
        %v817 = vadd.f32 0.0, %v816
        %818 = vmatmul.f32.gmra.mxu0 %v791
        %v819 = vpop.f32.mrf.mxu0
        %v820 = vadd.f32 0.0, %v819
        %821 = vmatmul.f32.gmra.mxu0 %v794
        %v822 = vpop.f32.mrf.mxu0
        %v823 = vadd.f32 0.0, %v822
        %824 = vdwg.mxu0
        %v825 = vadd.f32 %v734, %v738
        %v826 = vadd.f32 %v735, %v739
        %v827 = vadd.f32 %v736, %v740
        %v828 = vadd.f32 %v737, %v741
        %v830 = vsel %vm742, %v825, 0
        %v833 = vsel %vm742, %v826, 0
        %v836 = vsel %vm742, %v827, 0
        %v839 = vsel %vm742, %v828, 0
        %841 = vmatpush.msra.mxu0 0.0
        %842 = vmatpush.msra.mxu0 0.0
        %843 = vmatpush.msra.mxu0 0.0
        %844 = vmatpush.msra.mxu0 0.0
        %845 = vmatpush.msra.mxu0 0.0
        %846 = vmatpush.msra.mxu0 0.0
        %847 = vmatpush.msra.mxu0 0.0
        %848 = vmatpush.msra.mxu0 0.0
        %849 = vmatpush.msra.mxu0 0.0
        %850 = vmatpush.msra.mxu0 0.0
        %851 = vmatpush.msra.mxu0 0.0
        %852 = vmatpush.msra.mxu0 0.0
        %853 = vmatpush.msra.mxu0 0.0
        %854 = vmatpush.msra.mxu0 0.0
        %855 = vmatpush.msra.mxu0 %v733
        %856 = vmatpush.msra.mxu0 %v732
        %857 = vmatmul.f32.gmra.mxu0 %v830
        %v858 = vpop.f32.mrf.mxu0
        %v859 = vadd.f32 0.0, %v858
        %860 = vmatmul.f32.gmra.mxu0 %v833
        %v861 = vpop.f32.mrf.mxu0
        %v862 = vadd.f32 0.0, %v861
        %863 = vmatmul.f32.gmra.mxu0 %v836
        %v864 = vpop.f32.mrf.mxu0
        %v865 = vadd.f32 0.0, %v864
        %866 = vmatmul.f32.gmra.mxu0 %v839
        %v867 = vpop.f32.mrf.mxu0
        %v868 = vadd.f32 0.0, %v867
        %869 = vdwg.mxu0
        %v870 = vsub.f32 %v773, %v814
        %v871 = vsub.f32 %v776, %v817
        %v872 = vsub.f32 %v779, %v820
        %v873 = vsub.f32 %v782, %v823
        %v874 = vsub.f32 %v859, %v773
        %v875 = vsub.f32 %v862, %v776
        %v876 = vsub.f32 %v865, %v779
        %v877 = vsub.f32 %v868, %v782
        %v878 = vsub.f32 %v874, %v814
        %v879 = vsub.f32 %v875, %v817
        %v880 = vsub.f32 %v876, %v820
        %v881 = vsub.f32 %v877, %v823
        %882 = vxpose.xlu0.b32.start [1/16] %v870, 128
        %883 = vxpose.xlu0.b32.cont [2/16] %v871, 128
        %884 = vxpose.xlu0.b32.cont [3/16] 0.0, 128
        %885 = vxpose.xlu0.b32.cont [4/16] 0.0, 128
        %886 = vxpose.xlu0.b32.cont [5/16] 0.0, 128
        %887 = vxpose.xlu0.b32.cont [6/16] 0.0, 128
        %888 = vxpose.xlu0.b32.cont [7/16] 0.0, 128
        %889 = vxpose.xlu0.b32.cont [8/16] 0.0, 128
        %890 = vxpose.xlu0.b32.cont [9/16] 0.0, 128
        %891 = vxpose.xlu0.b32.cont [10/16] 0.0, 128
        %892 = vxpose.xlu0.b32.cont [11/16] 0.0, 128
        %893 = vxpose.xlu0.b32.cont [12/16] 0.0, 128
        %894 = vxpose.xlu0.b32.cont [13/16] 0.0, 128
        %895 = vxpose.xlu0.b32.cont [14/16] 0.0, 128
        %896 = vxpose.xlu0.b32.cont [15/16] 0.0, 128
        %897 = vxpose.xlu0.b32.end [16/16] 0.0, 128
        %v898 = vpop.trf.xlu0
        %v899 = vpop.trf.xlu0
        %v900 = vpop.trf.xlu0
        %v901 = vpop.trf.xlu0
        %v902 = vpop.trf.xlu0
        %v903 = vpop.trf.xlu0
        %v904 = vpop.trf.xlu0
        %v905 = vpop.trf.xlu0
        %v906 = vpop.trf.xlu0
        %v907 = vpop.trf.xlu0
        %v908 = vpop.trf.xlu0
        %v909 = vpop.trf.xlu0
        %v910 = vpop.trf.xlu0
        %v911 = vpop.trf.xlu0
        %v912 = vpop.trf.xlu0
        %v913 = vpop.trf.xlu0
        %914 = vxpose.xlu0.b32.start [1/16] %v872, 128
        %915 = vxpose.xlu0.b32.cont [2/16] %v873, 128
        %916 = vxpose.xlu0.b32.cont [3/16] 0.0, 128
        %917 = vxpose.xlu0.b32.cont [4/16] 0.0, 128
        %918 = vxpose.xlu0.b32.cont [5/16] 0.0, 128
        %919 = vxpose.xlu0.b32.cont [6/16] 0.0, 128
        %920 = vxpose.xlu0.b32.cont [7/16] 0.0, 128
        %921 = vxpose.xlu0.b32.cont [8/16] 0.0, 128
        %922 = vxpose.xlu0.b32.cont [9/16] 0.0, 128
        %923 = vxpose.xlu0.b32.cont [10/16] 0.0, 128
        %924 = vxpose.xlu0.b32.cont [11/16] 0.0, 128
        %925 = vxpose.xlu0.b32.cont [12/16] 0.0, 128
        %926 = vxpose.xlu0.b32.cont [13/16] 0.0, 128
        %927 = vxpose.xlu0.b32.cont [14/16] 0.0, 128
        %928 = vxpose.xlu0.b32.cont [15/16] 0.0, 128
        %929 = vxpose.xlu0.b32.end [16/16] 0.0, 128
        %v930 = vpop.trf.xlu0
        %v931 = vpop.trf.xlu0
        %v932 = vpop.trf.xlu0
        %v933 = vpop.trf.xlu0
        %v934 = vpop.trf.xlu0
        %v935 = vpop.trf.xlu0
        %v936 = vpop.trf.xlu0
        %v937 = vpop.trf.xlu0
        %v938 = vpop.trf.xlu0
        %v939 = vpop.trf.xlu0
        %v940 = vpop.trf.xlu0
        %v941 = vpop.trf.xlu0
        %v942 = vpop.trf.xlu0
        %v943 = vpop.trf.xlu0
        %v944 = vpop.trf.xlu0
        %v945 = vpop.trf.xlu0
        %946 = vxpose.xlu0.b32.start [1/16] %v878, 128
        %947 = vxpose.xlu0.b32.cont [2/16] %v879, 128
        %948 = vxpose.xlu0.b32.cont [3/16] 0.0, 128
        %949 = vxpose.xlu0.b32.cont [4/16] 0.0, 128
        %950 = vxpose.xlu0.b32.cont [5/16] 0.0, 128
        %951 = vxpose.xlu0.b32.cont [6/16] 0.0, 128
        %952 = vxpose.xlu0.b32.cont [7/16] 0.0, 128
        %953 = vxpose.xlu0.b32.cont [8/16] 0.0, 128
        %954 = vxpose.xlu0.b32.cont [9/16] 0.0, 128
        %955 = vxpose.xlu0.b32.cont [10/16] 0.0, 128
        %956 = vxpose.xlu0.b32.cont [11/16] 0.0, 128
        %957 = vxpose.xlu0.b32.cont [12/16] 0.0, 128
        %958 = vxpose.xlu0.b32.cont [13/16] 0.0, 128
        %959 = vxpose.xlu0.b32.cont [14/16] 0.0, 128
        %960 = vxpose.xlu0.b32.cont [15/16] 0.0, 128
        %961 = vxpose.xlu0.b32.end [16/16] 0.0, 128
        %v962 = vpop.trf.xlu0
        %v963 = vpop.trf.xlu0
        %v964 = vpop.trf.xlu0
        %v965 = vpop.trf.xlu0
        %v966 = vpop.trf.xlu0
        %v967 = vpop.trf.xlu0
        %v968 = vpop.trf.xlu0
        %v969 = vpop.trf.xlu0
        %v970 = vpop.trf.xlu0
        %v971 = vpop.trf.xlu0
        %v972 = vpop.trf.xlu0
        %v973 = vpop.trf.xlu0
        %v974 = vpop.trf.xlu0
        %v975 = vpop.trf.xlu0
        %v976 = vpop.trf.xlu0
        %v977 = vpop.trf.xlu0
        %978 = vxpose.xlu0.b32.start [1/16] %v880, 128
        %979 = vxpose.xlu0.b32.cont [2/16] %v881, 128
        %980 = vxpose.xlu0.b32.cont [3/16] 0.0, 128
        %981 = vxpose.xlu0.b32.cont [4/16] 0.0, 128
        %982 = vxpose.xlu0.b32.cont [5/16] 0.0, 128
        %983 = vxpose.xlu0.b32.cont [6/16] 0.0, 128
        %984 = vxpose.xlu0.b32.cont [7/16] 0.0, 128
        %985 = vxpose.xlu0.b32.cont [8/16] 0.0, 128
        %986 = vxpose.xlu0.b32.cont [9/16] 0.0, 128
        %987 = vxpose.xlu0.b32.cont [10/16] 0.0, 128
        %988 = vxpose.xlu0.b32.cont [11/16] 0.0, 128
        %989 = vxpose.xlu0.b32.cont [12/16] 0.0, 128
        %990 = vxpose.xlu0.b32.cont [13/16] 0.0, 128
        %991 = vxpose.xlu0.b32.cont [14/16] 0.0, 128
        %992 = vxpose.xlu0.b32.cont [15/16] 0.0, 128
        %993 = vxpose.xlu0.b32.end [16/16] 0.0, 128
        %v994 = vpop.trf.xlu0
        %v995 = vpop.trf.xlu0
        %v996 = vpop.trf.xlu0
        %v997 = vpop.trf.xlu0
        %v998 = vpop.trf.xlu0
        %v999 = vpop.trf.xlu0
        %v1000 = vpop.trf.xlu0
        %v1001 = vpop.trf.xlu0
        %v1002 = vpop.trf.xlu0
        %v1003 = vpop.trf.xlu0
        %v1004 = vpop.trf.xlu0
        %v1005 = vpop.trf.xlu0
        %v1006 = vpop.trf.xlu0
        %v1007 = vpop.trf.xlu0
        %v1008 = vpop.trf.xlu0
        %v1009 = vpop.trf.xlu0
        %v1011 = vsel %vm742, %v898, 0
        %v1014 = vsel %vm742, %v899, 0
        %v1017 = vsel %vm742, %v930, 0
        %v1020 = vsel %vm742, %v931, 0
        %1022 = vmatpush.msra.mxu0 0.0
        %1023 = vmatpush.msra.mxu0 0.0
        %1024 = vmatpush.msra.mxu0 0.0
        %1025 = vmatpush.msra.mxu0 0.0
        %1026 = vmatpush.msra.mxu0 0.0
        %1027 = vmatpush.msra.mxu0 0.0
        %1028 = vmatpush.msra.mxu0 0.0
        %1029 = vmatpush.msra.mxu0 0.0
        %1030 = vmatpush.msra.mxu0 0.0
        %1031 = vmatpush.msra.mxu0 0.0
        %1032 = vmatpush.msra.mxu0 0.0
        %1033 = vmatpush.msra.mxu0 0.0
        %1034 = vmatpush.msra.mxu0 0.0
        %1035 = vmatpush.msra.mxu0 0.0
        %1036 = vmatpush.msra.mxu0 %v723
        %1037 = vmatpush.msra.mxu0 %v722
        %1038 = vmatmul.f32.gmra.mxu0 %v1011
        %v1039 = vpop.f32.mrf.mxu0
        %v1040 = vadd.f32 0.0, %v1039
        %1041 = vmatmul.f32.gmra.mxu0 %v1014
        %v1042 = vpop.f32.mrf.mxu0
        %v1043 = vadd.f32 0.0, %v1042
        %1044 = vmatmul.f32.gmra.mxu0 %v1017
        %v1045 = vpop.f32.mrf.mxu0
        %v1046 = vadd.f32 0.0, %v1045
        %1047 = vmatmul.f32.gmra.mxu0 %v1020
        %v1048 = vpop.f32.mrf.mxu0
        %v1049 = vadd.f32 0.0, %v1048
        %1050 = vdwg.mxu0
        %v1052 = vsel %vm742, %v962, 0
        %v1055 = vsel %vm742, %v963, 0
        %v1058 = vsel %vm742, %v994, 0
        %v1061 = vsel %vm742, %v995, 0
        %1063 = vmatpush.msra.mxu0 0.0
        %1064 = vmatpush.msra.mxu0 0.0
        %1065 = vmatpush.msra.mxu0 0.0
        %1066 = vmatpush.msra.mxu0 0.0
        %1067 = vmatpush.msra.mxu0 0.0
        %1068 = vmatpush.msra.mxu0 0.0
        %1069 = vmatpush.msra.mxu0 0.0
        %1070 = vmatpush.msra.mxu0 0.0
        %1071 = vmatpush.msra.mxu0 0.0
        %1072 = vmatpush.msra.mxu0 0.0
        %1073 = vmatpush.msra.mxu0 0.0
        %1074 = vmatpush.msra.mxu0 0.0
        %1075 = vmatpush.msra.mxu0 0.0
        %1076 = vmatpush.msra.mxu0 0.0
        %1077 = vmatpush.msra.mxu0 %v725
        %1078 = vmatpush.msra.mxu0 %v724
        %1079 = vmatmul.f32.gmra.mxu0 %v1052
        %v1080 = vpop.f32.mrf.mxu0
        %v1081 = vadd.f32 0.0, %v1080
        %1082 = vmatmul.f32.gmra.mxu0 %v1055
        %v1083 = vpop.f32.mrf.mxu0
        %v1084 = vadd.f32 0.0, %v1083
        %1085 = vmatmul.f32.gmra.mxu0 %v1058
        %v1086 = vpop.f32.mrf.mxu0
        %v1087 = vadd.f32 0.0, %v1086
        %1088 = vmatmul.f32.gmra.mxu0 %v1061
        %v1089 = vpop.f32.mrf.mxu0
        %v1090 = vadd.f32 0.0, %v1089
        %1091 = vdwg.mxu0
        %v1092 = vadd.f32 %v898, %v962
        %v1093 = vadd.f32 %v899, %v963
        %v1094 = vadd.f32 %v930, %v994
        %v1095 = vadd.f32 %v931, %v995
        %v1097 = vsel %vm742, %v1092, 0
        %v1100 = vsel %vm742, %v1093, 0
        %v1103 = vsel %vm742, %v1094, 0
        %v1106 = vsel %vm742, %v1095, 0
        %1108 = vmatpush.msra.mxu0 0.0
        %1109 = vmatpush.msra.mxu0 0.0
        %1110 = vmatpush.msra.mxu0 0.0
        %1111 = vmatpush.msra.mxu0 0.0
        %1112 = vmatpush.msra.mxu0 0.0
        %1113 = vmatpush.msra.mxu0 0.0
        %1114 = vmatpush.msra.mxu0 0.0
        %1115 = vmatpush.msra.mxu0 0.0
        %1116 = vmatpush.msra.mxu0 0.0
        %1117 = vmatpush.msra.mxu0 0.0
        %1118 = vmatpush.msra.mxu0 0.0
        %1119 = vmatpush.msra.mxu0 0.0
        %1120 = vmatpush.msra.mxu0 0.0
        %1121 = vmatpush.msra.mxu0 0.0
        %1122 = vmatpush.msra.mxu0 %v727
        %1123 = vmatpush.msra.mxu0 %v726
        %1124 = vmatmul.f32.gmra.mxu0 %v1097
        %v1125 = vpop.f32.mrf.mxu0
        %v1126 = vadd.f32 0.0, %v1125
        %1127 = vmatmul.f32.gmra.mxu0 %v1100
        %v1128 = vpop.f32.mrf.mxu0
        %v1129 = vadd.f32 0.0, %v1128
        %1130 = vmatmul.f32.gmra.mxu0 %v1103
        %v1131 = vpop.f32.mrf.mxu0
        %v1132 = vadd.f32 0.0, %v1131
        %1133 = vmatmul.f32.gmra.mxu0 %v1106
        %v1134 = vpop.f32.mrf.mxu0
        %v1135 = vadd.f32 0.0, %v1134
        %1136 = vdwg.mxu0
        %v1137 = vsub.f32 %v1040, %v1081
        %v1138 = vsub.f32 %v1043, %v1084
        %v1139 = vsub.f32 %v1046, %v1087
        %v1140 = vsub.f32 %v1049, %v1090
        %v1141 = vsub.f32 %v1126, %v1040
        %v1142 = vsub.f32 %v1129, %v1043
        %v1143 = vsub.f32 %v1132, %v1046
        %v1144 = vsub.f32 %v1135, %v1049
        %v1145 = vsub.f32 %v1141, %v1081
        %v1146 = vsub.f32 %v1142, %v1084
        %v1147 = vsub.f32 %v1143, %v1087
        %v1148 = vsub.f32 %v1144, %v1090
        %v1149 = vld [vmem:[#allocation11] sm:$0xff]
        %v1150 = vld [vmem:[#allocation11 + $0x8] sm:$0xff]
        %v1151 = vstv %s721
        %v1152 = vmul.f32 %v1151, %v1149
        %v1153 = vmul.f32 %v1151, %v1150
        %v1154 = vsub.f32 1.0, %v1152
        %v1155 = vsub.f32 1.0, %v1153
        %v1156 = vmul.f32 %v1154, %v1137
        %v1157 = vmul.f32 %v1155, %v1138
        %v1158 = vmul.f32 %v1154, %v1139
        %v1159 = vmul.f32 %v1155, %v1140
        %v1160 = vld [vmem:[%s606] sm:$0xff]
        %v1161 = vld [vmem:[%s606 + $0x8] sm:$0xff]
        %v1162 = vld [vmem:[%s606 + $0x10] sm:$0xff]
        %v1163 = vld [vmem:[%s606 + $0x18] sm:$0xff]
        %v1164 = vmul.f32 %v1151, %v1160
        %v1165 = vmul.f32 %v1151, %v1161
        %v1166 = vmul.f32 %v1151, %v1162
        %v1167 = vmul.f32 %v1151, %v1163
        %v1168 = vadd.f32 %v1156, %v1164
        %v1169 = vadd.f32 %v1157, %v1165
        %v1170 = vadd.f32 %v1158, %v1166
        %v1171 = vadd.f32 %v1159, %v1167
        %v1172 = vmul.f32 %v1154, %v1145
        %v1173 = vmul.f32 %v1155, %v1146
        %v1174 = vmul.f32 %v1154, %v1147
        %v1175 = vmul.f32 %v1155, %v1148
        %v1176 = vld [vmem:[%s616] sm:$0xff]
        %v1177 = vld [vmem:[%s616 + $0x8] sm:$0xff]
        %v1178 = vld [vmem:[%s616 + $0x10] sm:$0xff]
        %v1179 = vld [vmem:[%s616 + $0x18] sm:$0xff]
        %v1180 = vmul.f32 %v1151, %v1176
        %v1181 = vmul.f32 %v1151, %v1177
        %v1182 = vmul.f32 %v1151, %v1178
        %v1183 = vmul.f32 %v1151, %v1179
        %v1184 = vadd.f32 %v1172, %v1180
        %v1185 = vadd.f32 %v1173, %v1181
        %v1186 = vadd.f32 %v1174, %v1182
        %v1187 = vadd.f32 %v1175, %v1183
        %v1189 = vsel %vm742, %v1168, 0
        %v1192 = vsel %vm742, %v1169, 0
        %v1195 = vsel %vm742, %v1170, 0
        %v1198 = vsel %vm742, %v1171, 0
        %1200 = vmatpush.msra.mxu0 0.0
        %1201 = vmatpush.msra.mxu0 0.0
        %1202 = vmatpush.msra.mxu0 0.0
        %1203 = vmatpush.msra.mxu0 0.0
        %1204 = vmatpush.msra.mxu0 0.0
        %1205 = vmatpush.msra.mxu0 0.0
        %1206 = vmatpush.msra.mxu0 0.0
        %1207 = vmatpush.msra.mxu0 0.0
        %1208 = vmatpush.msra.mxu0 0.0
        %1209 = vmatpush.msra.mxu0 0.0
        %1210 = vmatpush.msra.mxu0 0.0
        %1211 = vmatpush.msra.mxu0 0.0
        %1212 = vmatpush.msra.mxu0 0.0
        %1213 = vmatpush.msra.mxu0 0.0
        %1214 = vmatpush.msra.mxu0 %v723
        %1215 = vmatpush.msra.mxu0 %v722
        %1216 = vmatmul.f32.gmra.mxu0 %v1189
        %v1217 = vpop.f32.mrf.mxu0
        %v1218 = vadd.f32 0.0, %v1217
        %1219 = vmatmul.f32.gmra.mxu0 %v1192
        %v1220 = vpop.f32.mrf.mxu0
        %v1221 = vadd.f32 0.0, %v1220
        %1222 = vmatmul.f32.gmra.mxu0 %v1195
        %v1223 = vpop.f32.mrf.mxu0
        %v1224 = vadd.f32 0.0, %v1223
        %1225 = vmatmul.f32.gmra.mxu0 %v1198
        %v1226 = vpop.f32.mrf.mxu0
        %v1227 = vadd.f32 0.0, %v1226
        %1228 = vdwg.mxu0
        %v1230 = vsel %vm742, %v1184, 0
        %v1233 = vsel %vm742, %v1185, 0
        %v1236 = vsel %vm742, %v1186, 0
        %v1239 = vsel %vm742, %v1187, 0
        %1241 = vmatpush.msra.mxu0 0.0
        %1242 = vmatpush.msra.mxu0 0.0
        %1243 = vmatpush.msra.mxu0 0.0
        %1244 = vmatpush.msra.mxu0 0.0
        %1245 = vmatpush.msra.mxu0 0.0
        %1246 = vmatpush.msra.mxu0 0.0
        %1247 = vmatpush.msra.mxu0 0.0
        %1248 = vmatpush.msra.mxu0 0.0
        %1249 = vmatpush.msra.mxu0 0.0
        %1250 = vmatpush.msra.mxu0 0.0
        %1251 = vmatpush.msra.mxu0 0.0
        %1252 = vmatpush.msra.mxu0 0.0
        %1253 = vmatpush.msra.mxu0 0.0
        %1254 = vmatpush.msra.mxu0 0.0
        %1255 = vmatpush.msra.mxu0 %v725
        %1256 = vmatpush.msra.mxu0 %v724
        %1257 = vmatmul.f32.gmra.mxu0 %v1230
        %v1258 = vpop.f32.mrf.mxu0
        %v1259 = vadd.f32 0.0, %v1258
        %1260 = vmatmul.f32.gmra.mxu0 %v1233
        %v1261 = vpop.f32.mrf.mxu0
        %v1262 = vadd.f32 0.0, %v1261
        %1263 = vmatmul.f32.gmra.mxu0 %v1236
        %v1264 = vpop.f32.mrf.mxu0
        %v1265 = vadd.f32 0.0, %v1264
        %1266 = vmatmul.f32.gmra.mxu0 %v1239
        %v1267 = vpop.f32.mrf.mxu0
        %v1268 = vadd.f32 0.0, %v1267
        %1269 = vdwg.mxu0
        %v1270 = vsub.f32 %v1168, %v1184
        %v1271 = vsub.f32 %v1169, %v1185
        %v1272 = vsub.f32 %v1170, %v1186
        %v1273 = vsub.f32 %v1171, %v1187
        %v1275 = vsel %vm742, %v1270, 0
        %v1278 = vsel %vm742, %v1271, 0
        %v1281 = vsel %vm742, %v1272, 0
        %v1284 = vsel %vm742, %v1273, 0
        %1286 = vmatpush.msra.mxu0 0.0
        %1287 = vmatpush.msra.mxu0 0.0
        %1288 = vmatpush.msra.mxu0 0.0
        %1289 = vmatpush.msra.mxu0 0.0
        %1290 = vmatpush.msra.mxu0 0.0
        %1291 = vmatpush.msra.mxu0 0.0
        %1292 = vmatpush.msra.mxu0 0.0
        %1293 = vmatpush.msra.mxu0 0.0
        %1294 = vmatpush.msra.mxu0 0.0
        %1295 = vmatpush.msra.mxu0 0.0
        %1296 = vmatpush.msra.mxu0 0.0
        %1297 = vmatpush.msra.mxu0 0.0
        %1298 = vmatpush.msra.mxu0 0.0
        %1299 = vmatpush.msra.mxu0 0.0
        %1300 = vmatpush.msra.mxu0 %v727
        %1301 = vmatpush.msra.mxu0 %v726
        %1302 = vmatmul.f32.gmra.mxu0 %v1275
        %v1303 = vpop.f32.mrf.mxu0
        %v1304 = vadd.f32 0.0, %v1303
        %1305 = vmatmul.f32.gmra.mxu0 %v1278
        %v1306 = vpop.f32.mrf.mxu0
        %v1307 = vadd.f32 0.0, %v1306
        %1308 = vmatmul.f32.gmra.mxu0 %v1281
        %v1309 = vpop.f32.mrf.mxu0
        %v1310 = vadd.f32 0.0, %v1309
        %1311 = vmatmul.f32.gmra.mxu0 %v1284
        %v1312 = vpop.f32.mrf.mxu0
        %v1313 = vadd.f32 0.0, %v1312
        %1314 = vdwg.mxu0
        %v1315 = vadd.f32 %v1218, %v1259
        %v1316 = vadd.f32 %v1221, %v1262
        %v1317 = vadd.f32 %v1224, %v1265
        %v1318 = vadd.f32 %v1227, %v1268
        %v1319 = vsub.f32 %v1218, %v1259
        %v1320 = vsub.f32 %v1221, %v1262
        %v1321 = vsub.f32 %v1224, %v1265
        %v1322 = vsub.f32 %v1227, %v1268
        %v1323 = vsub.f32 %v1319, %v1304
        %v1324 = vsub.f32 %v1320, %v1307
        %v1325 = vsub.f32 %v1321, %v1310
        %v1326 = vsub.f32 %v1322, %v1313
        %1327 = vxpose.xlu0.b32.start [1/16] %v1315, 128
        %1328 = vxpose.xlu0.b32.cont [2/16] %v1316, 128
        %1329 = vxpose.xlu0.b32.cont [3/16] 0.0, 128
        %1330 = vxpose.xlu0.b32.cont [4/16] 0.0, 128
        %1331 = vxpose.xlu0.b32.cont [5/16] 0.0, 128
        %1332 = vxpose.xlu0.b32.cont [6/16] 0.0, 128
        %1333 = vxpose.xlu0.b32.cont [7/16] 0.0, 128
        %1334 = vxpose.xlu0.b32.cont [8/16] 0.0, 128
        %1335 = vxpose.xlu0.b32.cont [9/16] 0.0, 128
        %1336 = vxpose.xlu0.b32.cont [10/16] 0.0, 128
        %1337 = vxpose.xlu0.b32.cont [11/16] 0.0, 128
        %1338 = vxpose.xlu0.b32.cont [12/16] 0.0, 128
        %1339 = vxpose.xlu0.b32.cont [13/16] 0.0, 128
        %1340 = vxpose.xlu0.b32.cont [14/16] 0.0, 128
        %1341 = vxpose.xlu0.b32.cont [15/16] 0.0, 128
        %1342 = vxpose.xlu0.b32.end [16/16] 0.0, 128
        %v1343 = vpop.trf.xlu0
        %v1344 = vpop.trf.xlu0
        %v1345 = vpop.trf.xlu0
        %v1346 = vpop.trf.xlu0
        %v1347 = vpop.trf.xlu0
        %v1348 = vpop.trf.xlu0
        %v1349 = vpop.trf.xlu0
        %v1350 = vpop.trf.xlu0
        %v1351 = vpop.trf.xlu0
        %v1352 = vpop.trf.xlu0
        %v1353 = vpop.trf.xlu0
        %v1354 = vpop.trf.xlu0
        %v1355 = vpop.trf.xlu0
        %v1356 = vpop.trf.xlu0
        %v1357 = vpop.trf.xlu0
        %v1358 = vpop.trf.xlu0
        %1359 = vxpose.xlu0.b32.start [1/16] %v1317, 128
        %1360 = vxpose.xlu0.b32.cont [2/16] %v1318, 128
        %1361 = vxpose.xlu0.b32.cont [3/16] 0.0, 128
        %1362 = vxpose.xlu0.b32.cont [4/16] 0.0, 128
        %1363 = vxpose.xlu0.b32.cont [5/16] 0.0, 128
        %1364 = vxpose.xlu0.b32.cont [6/16] 0.0, 128
        %1365 = vxpose.xlu0.b32.cont [7/16] 0.0, 128
        %1366 = vxpose.xlu0.b32.cont [8/16] 0.0, 128
        %1367 = vxpose.xlu0.b32.cont [9/16] 0.0, 128
        %1368 = vxpose.xlu0.b32.cont [10/16] 0.0, 128
        %1369 = vxpose.xlu0.b32.cont [11/16] 0.0, 128
        %1370 = vxpose.xlu0.b32.cont [12/16] 0.0, 128
        %1371 = vxpose.xlu0.b32.cont [13/16] 0.0, 128
        %1372 = vxpose.xlu0.b32.cont [14/16] 0.0, 128
        %1373 = vxpose.xlu0.b32.cont [15/16] 0.0, 128
        %1374 = vxpose.xlu0.b32.end [16/16] 0.0, 128
        %v1375 = vpop.trf.xlu0
        %v1376 = vpop.trf.xlu0
        %v1377 = vpop.trf.xlu0
        %v1378 = vpop.trf.xlu0
        %v1379 = vpop.trf.xlu0
        %v1380 = vpop.trf.xlu0
        %v1381 = vpop.trf.xlu0
        %v1382 = vpop.trf.xlu0
        %v1383 = vpop.trf.xlu0
        %v1384 = vpop.trf.xlu0
        %v1385 = vpop.trf.xlu0
        %v1386 = vpop.trf.xlu0
        %v1387 = vpop.trf.xlu0
        %v1388 = vpop.trf.xlu0
        %v1389 = vpop.trf.xlu0
        %v1390 = vpop.trf.xlu0
        %1391 = vxpose.xlu0.b32.start [1/16] %v1323, 128
        %1392 = vxpose.xlu0.b32.cont [2/16] %v1324, 128
        %1393 = vxpose.xlu0.b32.cont [3/16] 0.0, 128
        %1394 = vxpose.xlu0.b32.cont [4/16] 0.0, 128
        %1395 = vxpose.xlu0.b32.cont [5/16] 0.0, 128
        %1396 = vxpose.xlu0.b32.cont [6/16] 0.0, 128
        %1397 = vxpose.xlu0.b32.cont [7/16] 0.0, 128
        %1398 = vxpose.xlu0.b32.cont [8/16] 0.0, 128
        %1399 = vxpose.xlu0.b32.cont [9/16] 0.0, 128
        %1400 = vxpose.xlu0.b32.cont [10/16] 0.0, 128
        %1401 = vxpose.xlu0.b32.cont [11/16] 0.0, 128
        %1402 = vxpose.xlu0.b32.cont [12/16] 0.0, 128
        %1403 = vxpose.xlu0.b32.cont [13/16] 0.0, 128
        %1404 = vxpose.xlu0.b32.cont [14/16] 0.0, 128
        %1405 = vxpose.xlu0.b32.cont [15/16] 0.0, 128
        %1406 = vxpose.xlu0.b32.end [16/16] 0.0, 128
        %v1407 = vpop.trf.xlu0
        %v1408 = vpop.trf.xlu0
        %v1409 = vpop.trf.xlu0
        %v1410 = vpop.trf.xlu0
        %v1411 = vpop.trf.xlu0
        %v1412 = vpop.trf.xlu0
        %v1413 = vpop.trf.xlu0
        %v1414 = vpop.trf.xlu0
        %v1415 = vpop.trf.xlu0
        %v1416 = vpop.trf.xlu0
        %v1417 = vpop.trf.xlu0
        %v1418 = vpop.trf.xlu0
        %v1419 = vpop.trf.xlu0
        %v1420 = vpop.trf.xlu0
        %v1421 = vpop.trf.xlu0
        %v1422 = vpop.trf.xlu0
        %1423 = vxpose.xlu0.b32.start [1/16] %v1325, 128
        %1424 = vxpose.xlu0.b32.cont [2/16] %v1326, 128
        %1425 = vxpose.xlu0.b32.cont [3/16] 0.0, 128
        %1426 = vxpose.xlu0.b32.cont [4/16] 0.0, 128
        %1427 = vxpose.xlu0.b32.cont [5/16] 0.0, 128
        %1428 = vxpose.xlu0.b32.cont [6/16] 0.0, 128
        %1429 = vxpose.xlu0.b32.cont [7/16] 0.0, 128
        %1430 = vxpose.xlu0.b32.cont [8/16] 0.0, 128
        %1431 = vxpose.xlu0.b32.cont [9/16] 0.0, 128
        %1432 = vxpose.xlu0.b32.cont [10/16] 0.0, 128
        %1433 = vxpose.xlu0.b32.cont [11/16] 0.0, 128
        %1434 = vxpose.xlu0.b32.cont [12/16] 0.0, 128
        %1435 = vxpose.xlu0.b32.cont [13/16] 0.0, 128
        %1436 = vxpose.xlu0.b32.cont [14/16] 0.0, 128
        %1437 = vxpose.xlu0.b32.cont [15/16] 0.0, 128
        %1438 = vxpose.xlu0.b32.end [16/16] 0.0, 128
        %v1439 = vpop.trf.xlu0
        %v1440 = vpop.trf.xlu0
        %v1441 = vpop.trf.xlu0
        %v1442 = vpop.trf.xlu0
        %v1443 = vpop.trf.xlu0
        %v1444 = vpop.trf.xlu0
        %v1445 = vpop.trf.xlu0
        %v1446 = vpop.trf.xlu0
        %v1447 = vpop.trf.xlu0
        %v1448 = vpop.trf.xlu0
        %v1449 = vpop.trf.xlu0
        %v1450 = vpop.trf.xlu0
        %v1451 = vpop.trf.xlu0
        %v1452 = vpop.trf.xlu0
        %v1453 = vpop.trf.xlu0
        %v1454 = vpop.trf.xlu0
        %v1456 = vsel %vm742, %v1343, 0
        %v1459 = vsel %vm742, %v1344, 0
        %v1462 = vsel %vm742, %v1375, 0
        %v1465 = vsel %vm742, %v1376, 0
        %1467 = vmatpush.msra.mxu0 0.0
        %1468 = vmatpush.msra.mxu0 0.0
        %1469 = vmatpush.msra.mxu0 0.0
        %1470 = vmatpush.msra.mxu0 0.0
        %1471 = vmatpush.msra.mxu0 0.0
        %1472 = vmatpush.msra.mxu0 0.0
        %1473 = vmatpush.msra.mxu0 0.0
        %1474 = vmatpush.msra.mxu0 0.0
        %1475 = vmatpush.msra.mxu0 0.0
        %1476 = vmatpush.msra.mxu0 0.0
        %1477 = vmatpush.msra.mxu0 0.0
        %1478 = vmatpush.msra.mxu0 0.0
        %1479 = vmatpush.msra.mxu0 0.0
        %1480 = vmatpush.msra.mxu0 0.0
        %1481 = vmatpush.msra.mxu0 %v729
        %1482 = vmatpush.msra.mxu0 %v728
        %1483 = vmatmul.f32.gmra.mxu0 %v1456
        %v1484 = vpop.f32.mrf.mxu0
        %v1485 = vadd.f32 0.0, %v1484
        %1486 = vmatmul.f32.gmra.mxu0 %v1459
        %v1487 = vpop.f32.mrf.mxu0
        %v1488 = vadd.f32 0.0, %v1487
        %1489 = vmatmul.f32.gmra.mxu0 %v1462
        %v1490 = vpop.f32.mrf.mxu0
        %v1491 = vadd.f32 0.0, %v1490
        %1492 = vmatmul.f32.gmra.mxu0 %v1465
        %v1493 = vpop.f32.mrf.mxu0
        %v1494 = vadd.f32 0.0, %v1493
        %1495 = vdwg.mxu0
        %v1497 = vsel %vm742, %v1407, 0
        %v1500 = vsel %vm742, %v1408, 0
        %v1503 = vsel %vm742, %v1439, 0
        %v1506 = vsel %vm742, %v1440, 0
        %1508 = vmatpush.msra.mxu0 0.0
        %1509 = vmatpush.msra.mxu0 0.0
        %1510 = vmatpush.msra.mxu0 0.0
        %1511 = vmatpush.msra.mxu0 0.0
        %1512 = vmatpush.msra.mxu0 0.0
        %1513 = vmatpush.msra.mxu0 0.0
        %1514 = vmatpush.msra.mxu0 0.0
        %1515 = vmatpush.msra.mxu0 0.0
        %1516 = vmatpush.msra.mxu0 0.0
        %1517 = vmatpush.msra.mxu0 0.0
        %1518 = vmatpush.msra.mxu0 0.0
        %1519 = vmatpush.msra.mxu0 0.0
        %1520 = vmatpush.msra.mxu0 0.0
        %1521 = vmatpush.msra.mxu0 0.0
        %1522 = vmatpush.msra.mxu0 %v731
        %1523 = vmatpush.msra.mxu0 %v730
        %1524 = vmatmul.f32.gmra.mxu0 %v1497
        %v1525 = vpop.f32.mrf.mxu0
        %v1526 = vadd.f32 0.0, %v1525
        %1527 = vmatmul.f32.gmra.mxu0 %v1500
        %v1528 = vpop.f32.mrf.mxu0
        %v1529 = vadd.f32 0.0, %v1528
        %1530 = vmatmul.f32.gmra.mxu0 %v1503
        %v1531 = vpop.f32.mrf.mxu0
        %v1532 = vadd.f32 0.0, %v1531
        %1533 = vmatmul.f32.gmra.mxu0 %v1506
        %v1534 = vpop.f32.mrf.mxu0
        %v1535 = vadd.f32 0.0, %v1534
        %1536 = vdwg.mxu0
        %v1537 = vsub.f32 %v1343, %v1407
        %v1538 = vsub.f32 %v1344, %v1408
        %v1539 = vsub.f32 %v1375, %v1439
        %v1540 = vsub.f32 %v1376, %v1440
        %v1542 = vsel %vm742, %v1537, 0
        %v1545 = vsel %vm742, %v1538, 0
        %v1548 = vsel %vm742, %v1539, 0
        %v1551 = vsel %vm742, %v1540, 0
        %1553 = vmatpush.msra.mxu0 0.0
        %1554 = vmatpush.msra.mxu0 0.0
        %1555 = vmatpush.msra.mxu0 0.0
        %1556 = vmatpush.msra.mxu0 0.0
        %1557 = vmatpush.msra.mxu0 0.0
        %1558 = vmatpush.msra.mxu0 0.0
        %1559 = vmatpush.msra.mxu0 0.0
        %1560 = vmatpush.msra.mxu0 0.0
        %1561 = vmatpush.msra.mxu0 0.0
        %1562 = vmatpush.msra.mxu0 0.0
        %1563 = vmatpush.msra.mxu0 0.0
        %1564 = vmatpush.msra.mxu0 0.0
        %1565 = vmatpush.msra.mxu0 0.0
        %1566 = vmatpush.msra.mxu0 0.0
        %1567 = vmatpush.msra.mxu0 %v733
        %1568 = vmatpush.msra.mxu0 %v732
        %1569 = vmatmul.f32.gmra.mxu0 %v1542
        %v1570 = vpop.f32.mrf.mxu0
        %v1571 = vadd.f32 0.0, %v1570
        %1572 = vmatmul.f32.gmra.mxu0 %v1545
        %v1573 = vpop.f32.mrf.mxu0
        %v1574 = vadd.f32 0.0, %v1573
        %1575 = vmatmul.f32.gmra.mxu0 %v1548
        %v1576 = vpop.f32.mrf.mxu0
        %v1577 = vadd.f32 0.0, %v1576
        %1578 = vmatmul.f32.gmra.mxu0 %v1551
        %v1579 = vpop.f32.mrf.mxu0
        %v1580 = vadd.f32 0.0, %v1579
        %1581 = vdwg.mxu0
        %v1582 = vadd.f32 %v1485, %v1526
        %v1583 = vadd.f32 %v1488, %v1529
        %v1584 = vadd.f32 %v1491, %v1532
        %v1585 = vadd.f32 %v1494, %v1535
        %v1586 = vsub.f32 %v1485, %v1526
        %v1587 = vsub.f32 %v1488, %v1529
        %v1588 = vsub.f32 %v1491, %v1532
        %v1589 = vsub.f32 %v1494, %v1535
        %v1590 = vsub.f32 %v1586, %v1571
        %v1591 = vsub.f32 %v1587, %v1574
        %v1592 = vsub.f32 %v1588, %v1577
        %v1593 = vsub.f32 %v1589, %v1580
        %1594 = vst.msk [vmem:[%s707] sm:$0xff] %vm742, %v1582
        %1595 = vst.msk [vmem:[%s707 + $0x8] sm:$0xff] %vm742, %v1583
        %1596 = vst.msk [vmem:[%s707 + $0x10] sm:$0xff] %vm742, %v1584
        %1597 = vst.msk [vmem:[%s707 + $0x18] sm:$0xff] %vm742, %v1585
        %1598 = vst.msk [vmem:[%s714] sm:$0xff] %vm742, %v1590
        %1599 = vst.msk [vmem:[%s714 + $0x8] sm:$0xff] %vm742, %v1591
        %1600 = vst.msk [vmem:[%s714 + $0x10] sm:$0xff] %vm742, %v1592
        %1601 = vst.msk [vmem:[%s714 + $0x18] sm:$0xff] %vm742, %v1593
        %s1602 = sand.u32 %s324, 1
        %s1603 = scalar_lea.sflag [#allocation5], %s1602
        %s1604 = sand.u32 %s324, 1
        %s1605 = smul.addr %s1604, 32
        %s1606 = scalar_lea.vmem [#allocation21], %s1605
        %s1607 = sand.u32 %s350, 1
        %s1608 = scalar_lea.sflag [#allocation23], %s1607
        %s1609 = sand.u32 %s350, 1
        %s1610 = smul.addr %s1609, 32
        %s1611 = scalar_lea.vmem [#allocation22], %s1610
        // Predicated region
        $region113: #{tpu_custom_call.1} parent=67 // pred_check
          %p1612 = pneg %p334
        $region114: #{tpu_custom_call.1} parent=67 // pred_check_branch
          %1614 = sbr.rel (%p1612) target = $region116
        $region115: #{tpu_custom_call.1} parent=67 // pred_region
          %s1615 = smul.u32 2, %s44
          %1617 = vsyncadd %s1603, 0
          %s1618 = smul.addr %s1615, 2
          %s1619 = smul.addr %s1618, 8
          %s1620 = scalar_lea.hbm %s12, %s1619
          %s1621 = sshll.u32 %s1606, 4
          %s1622 = int_to_ptr.vmem [resolvable:$true] %s1621
          %s1623 = sshll.u32 %s1620, 4
          %s1624 = int_to_ptr.hbm [resolvable:$true] %s1623
          %1629 = dma.vmem_to_hbm [thread:$0]  %s1622, 512, %s1624, %s1603, 128, 128, 8
        $region116: #{tpu_custom_call.1} parent=67 // pred_fallthru
          _
        // Predicated region
        $region117: #{tpu_custom_call.1} parent=67 // pred_check
          %p1630 = pneg %p360
        $region118: #{tpu_custom_call.1} parent=67 // pred_check_branch
          %1632 = sbr.rel (%p1630) target = $region120
        $region119: #{tpu_custom_call.1} parent=67 // pred_region
          %s1633 = smul.u32 2, %s44
          %1635 = vsyncadd %s1608, 0
          %s1636 = smul.addr %s1633, 2
          %s1637 = smul.addr %s1636, 8
          %s1638 = scalar_lea.hbm %s13, %s1637
          %s1639 = sshll.u32 %s1611, 4
          %s1640 = int_to_ptr.vmem [resolvable:$true] %s1639
          %s1641 = sshll.u32 %s1638, 4
          %s1642 = int_to_ptr.hbm [resolvable:$true] %s1641
          %1647 = dma.vmem_to_hbm [thread:$0]  %s1640, 512, %s1642, %s1608, 128, 128, 8
        $region120: #{tpu_custom_call.1} parent=67 // pred_fallthru
          _
      $region68: #{tpu_custom_call.1} parent=5 // pred_fallthru
        _
      %p1648 = scmp.le.s32.totalorder 2, %s39
      // Predicated region
      $region121: #{tpu_custom_call.1} parent=5 // pred_check
        %p1649 = pneg %p1648
      $region122: #{tpu_custom_call.1} parent=5 // pred_check_branch
        %1651 = sbr.rel (%p1649) target = $region124
      $region123: #{tpu_custom_call.1} parent=5 // pred_region
        %s1652 = ssub.s32 %s39, 2
        // Predicated region
        $region125: #{tpu_custom_call.1} parent=123 // pred_check
          %p1653 = pneg %p340
        $region126: #{tpu_custom_call.1} parent=123 // pred_check_branch
          %1655 = sbr.rel (%p1653) target = $region128
        $region127: #{tpu_custom_call.1} parent=123 // pred_region
          %s1656 = sand.u32 %s325, 1
          %s1657 = scalar_lea.sflag [#allocation5], %s1656
          %s1658 = sand.u32 %s325, 1
          %s1659 = smul.addr %s1658, 32
          %s1660 = scalar_lea.vmem [#allocation21], %s1659
          %1662 = dma.done %s1657, 512
        $region128: #{tpu_custom_call.1} parent=123 // pred_fallthru
          _
        // Predicated region
        $region129: #{tpu_custom_call.1} parent=123 // pred_check
          %p1663 = pneg %p366
        $region130: #{tpu_custom_call.1} parent=123 // pred_check_branch
          %1665 = sbr.rel (%p1663) target = $region132
        $region131: #{tpu_custom_call.1} parent=123 // pred_region
          %s1666 = sand.u32 %s351, 1
          %s1667 = scalar_lea.sflag [#allocation23], %s1666
          %s1668 = sand.u32 %s351, 1
          %s1669 = smul.addr %s1668, 32
          %s1670 = scalar_lea.vmem [#allocation22], %s1669
          %1672 = dma.done %s1667, 512
        $region132: #{tpu_custom_call.1} parent=123 // pred_fallthru
          _
      $region124: #{tpu_custom_call.1} parent=5 // pred_fallthru
        _
    $region6: #{tpu_custom_call.1} parent=1 // loop_footer
      %s43 = sadd.s32 1, %s39
    $region7: #{tpu_custom_call.1} parent=1 // loop_footer_branch
      %38 = sbr.rel target = $region3
    $region8: #{tpu_custom_call.1} parent=1 // loop_exit
      _
    %1673 = vsyncpa [#allocation4], 1
    %s1674 = scalar_lea.sflag [#allocation4], 1
    %1675 = vsyncpa %s1674, 1
    %1676 = vsyncpa [#allocation7], 1
    %s1677 = scalar_lea.sflag [#allocation7], 1
    %1678 = vsyncpa %s1677, 1
    %1679 = vsyncpa [#allocation10], 1
    %s1680 = scalar_lea.sflag [#allocation10], 1
    %1681 = vsyncpa %s1680, 1
    %1682 = vsyncpa [#allocation13], 1
    %1683 = vsyncpa [#allocation16], 1
    %1684 = vsyncpa [#allocation19], 1
    %1685 = vsyncpa [#allocation5], 1
    %s1686 = scalar_lea.sflag [#allocation5], 1
    %1687 = vsyncpa %s1686, 1
    %1688 = vsyncpa [#allocation23], 1
    %s1689 = scalar_lea.sflag [#allocation23], 1
    %1690 = vsyncpa %s1689, 1

</llo_original>
